<compile_context>
chip_gen: v5e
topology: v5e:2x2
jax: 0.10.0
libtpu: 0.0.40
codegen_flags: <defaults>
</compile_context>

<pallas_src>
import functools

import jax
import jax.numpy as jnp
from jax.experimental import pallas as pl
from jax.experimental.pallas import tpu as pltpu

EPS = 1e-12
_MAX_ROW_TILE = 512
_MAX_T_CHUNK = 32


def _round_up(x, m):
    return ((x + m - 1) // m) * m


def _vmem_capacity_bytes():
    default = 64 * 1024 * 1024                       # conservative (v7x)
    get_info = getattr(pltpu, "get_tpu_info", None)
    if get_info is None:
        return default
    try:
        info = get_info()
    except Exception:
        return default
    for attr in ("vmem_capacity_bytes", "vmem_size_bytes", "vmem_bytes"):
        v = getattr(info, attr, None)
        if v:
            return int(v)
    return default


_VMEM_CAP = _vmem_capacity_bytes()                   # 128 MiB v5e/v6e, 64 MiB v7x
_VMEM_LIMIT = int(_VMEM_CAP * 3 // 4)                # scoped-vmem limit for Mosaic
_TILE_BUDGET = int(_VMEM_LIMIT * 4 // 5)             # headroom for compiler scratch


# --------------------------------------------------------------------------
# Dense (row-tiled) Pallas kernels
# --------------------------------------------------------------------------
def _in_block_kernel(x_ref, cb_ref, cs_ref, w_ref, g_ref, b_ref, o_ref):
    """transform_affine_in + Linear(bias=False) + folded eval-BN1 + tanh."""
    x = (x_ref[...] - cb_ref[...]) * cs_ref[...]                       # f32 affine
    y = jnp.dot(x.astype(w_ref.dtype), w_ref[...],                     # bf16 MXU
                preferred_element_type=jnp.float32)
    o_ref[...] = jnp.tanh(y * g_ref[...] + b_ref[...])


def _lstm_proj_x_kernel(x_ref, wf_ref, wb_ref, bf_ref, bb_ref, o_ref):
    """Layer-0 LSTM input projection for both directions: o[d] = x @ W_ih_d + b_d."""
    x = x_ref[...].astype(wf_ref.dtype)
    o_ref[0] = (jnp.dot(x, wf_ref[...], preferred_element_type=jnp.float32)
                + bf_ref[...]).astype(o_ref.dtype)
    o_ref[1] = (jnp.dot(x, wb_ref[...], preferred_element_type=jnp.float32)
                + bb_ref[...]).astype(o_ref.dtype)


def _lstm_proj_h_kernel(h_ref, wff_ref, wfb_ref, wbf_ref, wbb_ref,
                        bf_ref, bb_ref, o_ref):
    """Layer>=1 LSTM input projection fed by the previous layer's (h_fwd, h_bwd)
    as split-K row inputs (no concat materialization)."""
    hf = h_ref[0]                                                      # (rows, half) bf16
    hb = h_ref[1]
    yf = (jnp.dot(hf, wff_ref[...], preferred_element_type=jnp.float32)
          + jnp.dot(hb, wfb_ref[...], preferred_element_type=jnp.float32)
          + bf_ref[...])
    yb = (jnp.dot(hf, wbf_ref[...], preferred_element_type=jnp.float32)
          + jnp.dot(hb, wbb_ref[...], preferred_element_type=jnp.float32)
          + bb_ref[...])
    o_ref[0] = yf.astype(o_ref.dtype)
    o_ref[1] = yb.astype(o_ref.dtype)


def _block2_kernel(xs_ref, h_ref, wa_ref, wb_ref, wc_ref, g_ref, b_ref, o_ref):
    """cat([x_seq, h_fwd, h_bwd]) @ W2 as a split-K sum + folded eval-BN2 + relu."""
    y = jnp.dot(xs_ref[...].astype(wa_ref.dtype), wa_ref[...],
                preferred_element_type=jnp.float32)
    y = y + jnp.dot(h_ref[0], wb_ref[...], preferred_element_type=jnp.float32)
    y = y + jnp.dot(h_ref[1], wc_ref[...], preferred_element_type=jnp.float32)
    o_ref[...] = jnp.maximum(y * g_ref[...] + b_ref[...], 0.0).astype(o_ref.dtype)


def _block3_kernel(y_ref, mix_ref, w_ref, g_ref, b_ref, o_ref):
    """Linear + folded (BN3 ∘ affine_out) + relu + mask-multiply by the mixture."""
    z = jnp.dot(y_ref[...], w_ref[...], preferred_element_type=jnp.float32)
    z = jnp.maximum(z * g_ref[...] + b_ref[...], 0.0)
    o_ref[...] = z * mix_ref[...].astype(jnp.float32)


# --------------------------------------------------------------------------
# Row-tiled pallas_call helper
# --------------------------------------------------------------------------
def _rows_of(a):
    # 2-D arrays: rows on axis 0; 3-D (direction, rows, cols): rows on axis 1
    return a.shape[0] if a.ndim == 2 else a.shape[1]


def _row_spec(a, tile):
    if a.ndim == 2:
        return pl.BlockSpec((tile, a.shape[1]), lambda i: (i, 0))
    return pl.BlockSpec((a.shape[0], tile, a.shape[2]), lambda i: (0, i, 0))


def _const_spec(a):
    return pl.BlockSpec(a.shape, lambda i, _nd=a.ndim: (0,) * _nd)


def _choose_row_tile(n_rows, row_inputs, const_inputs, out_lead, out_cols, out_dtype):
    """Largest row tile that fits the VMEM budget (double-buffered IO + weights),
    preferring one that divides n_rows so no padding copies are needed."""
    fixed = sum(2 * int(a.size) * a.dtype.itemsize for a in const_inputs)
    per_row = 0
    for a in row_inputs:
        lead = 1 if a.ndim == 2 else a.shape[0]
        per_row += 2 * lead * a.shape[-1] * a.dtype.itemsize
    per_row += 2 * (out_lead or 1) * out_cols * jnp.dtype(out_dtype).itemsize
    cap = (_TILE_BUDGET - fixed) // max(per_row, 1)
    cap = int(max(8, min(cap, _MAX_ROW_TILE, _round_up(n_rows, 8))))
    cap -= cap % 8
    cap = max(cap, 8)
    t = cap
    while t >= 8:                                    # prefer a divisor of n_rows
        if n_rows % t == 0:
            return t, 0
        t -= 8
    return cap, _round_up(n_rows, cap) - n_rows      # fallback: pad last block


def _row_call(kernel, row_inputs, const_inputs, out_cols, *,
              out_dtype=jnp.float32, out_lead=None):
    n = _rows_of(row_inputs[0])
    tile, pad = _choose_row_tile(n, row_inputs, const_inputs,
                                 out_lead, out_cols, out_dtype)
    if pad:
        def _pad(a):
            widths = [(0, 0)] * a.ndim
            widths[0 if a.ndim == 2 else 1] = (0, pad)
            return jnp.pad(a, widths)
        row_inputs = [_pad(a) for a in row_inputs]
    n_pad = n + pad

    if out_lead is None:
        out_shape = jax.ShapeDtypeStruct((n_pad, out_cols), out_dtype)
        out_spec = pl.BlockSpec((tile, out_cols), lambda i: (i, 0))
    else:
        out_shape = jax.ShapeDtypeStruct((out_lead, n_pad, out_cols), out_dtype)
        out_spec = pl.BlockSpec((out_lead, tile, out_cols), lambda i: (0, i, 0))

    out = pl.pallas_call(
        kernel,
        out_shape=out_shape,
        grid=(n_pad // tile,),
        in_specs=[_row_spec(a, tile) for a in row_inputs]
                 + [_const_spec(a) for a in const_inputs],
        out_specs=out_spec,
        compiler_params=pltpu.CompilerParams(
            dimension_semantics=("parallel",),        # independent rows -> megacore
            vmem_limit_bytes=_VMEM_LIMIT),
    )(*row_inputs, *const_inputs)
    if pad:
        out = out[:n] if out_lead is None else out[:, :n]
    return out


# --------------------------------------------------------------------------
# Bidirectional LSTM: grid = (direction, time-chunks); recurrence in VMEM scratch
# --------------------------------------------------------------------------
def _bilstm_chunk_kernel(xp_ref, whh_ref, o_ref, h_sc, c_sc, *, t_chunk, half):
    """Process T_CHUNK time steps of one direction.

    xp_ref : (t_chunk, B, 4*half) bf16  precomputed W_ih@x_t + b_ih + b_hh
             (for the backward direction the index_map already delivers the
              time-reversed chunk; steps inside the chunk walk it backwards)
    whh_ref: (half, 4*half) bf16
    h/c scratch: (B, half) f32 persist across the sequential time-chunk axis.
    """
    d = pl.program_id(0)                 # 0 = forward, 1 = backward
    tc = pl.program_id(1)

    @pl.when(tc == 0)
    def _():
        h_sc[...] = jnp.zeros_like(h_sc)
        c_sc[...] = jnp.zeros_like(c_sc)

    whh = whh_ref[...]

    def step(s, carry):
        h, c = carry
        # forward walks the chunk 0..t_chunk-1; backward walks it t_chunk-1..0
        idx = d * (t_chunk - 1) + (1 - 2 * d) * s
        gates = xp_ref[idx].astype(jnp.float32) + jnp.dot(
            h.astype(whh.dtype), whh, preferred_element_type=jnp.float32)
        i = jax.nn.sigmoid(gates[:, 0 * half:1 * half])     # PyTorch gate order i,f,g,o
        f = jax.nn.sigmoid(gates[:, 1 * half:2 * half])
        g = jnp.tanh(gates[:, 2 * half:3 * half])
        o = jax.nn.sigmoid(gates[:, 3 * half:4 * half])
        c = f * c + i * g
        h = o * jnp.tanh(c)
        o_ref[idx] = h.astype(o_ref.dtype)
        return h, c

    h, c = jax.lax.fori_loop(0, t_chunk, step, (h_sc[...], c_sc[...]),
                             unroll=(t_chunk <= 8))
    h_sc[...] = h
    c_sc[...] = c


def _pick_time_chunk(t_len, max_chunk=_MAX_T_CHUNK):
    best = 1
    for c in range(1, min(t_len, max_chunk) + 1):
        if t_len % c == 0:
            best = c
    return best


def bilstm_layer(xp, whh, *, half, t_chunk):
    """xp : (2, T, B, 4*half) bf16   (both directions' input projections, natural time order)
       whh: (2, half, 4*half) bf16
       returns (2, T, B, half) bf16 hidden states in natural time order."""
    _, t_len, bsz, four_half = xp.shape
    n_tc = t_len // t_chunk

    def time_block(d, tc):
        # fwd reads chunk tc; bwd reads chunk n_tc-1-tc (time reversal via index_map)
        return d * (n_tc - 1) + (1 - 2 * d) * tc

    return pl.pallas_call(
        functools.partial(_bilstm_chunk_kernel, t_chunk=t_chunk, half=half),
        out_shape=jax.ShapeDtypeStruct((2, t_len, bsz, half), jnp.bfloat16),
        grid=(2, n_tc),
        in_specs=[
            pl.BlockSpec((None, t_chunk, bsz, four_half),
                         lambda d, tc: (d, time_block(d, tc), 0, 0)),
            pl.BlockSpec((None, half, four_half), lambda d, tc: (d, 0, 0)),
        ],
        out_specs=pl.BlockSpec((None, t_chunk, bsz, half),
                               lambda d, tc: (d, time_block(d, tc), 0, 0)),
        scratch_shapes=[
            pltpu.VMEM((bsz, half), jnp.float32),    # h carried across time chunks
            pltpu.VMEM((bsz, half), jnp.float32),    # c
        ],
        compiler_params=pltpu.CompilerParams(
            # direction axis is independent (-> both TensorCores on v7x);
            # the time axis carries the recurrence in scratch: keep it sequential.
            dimension_semantics=("parallel", "arbitrary"),
            vmem_limit_bytes=_VMEM_LIMIT),
    )(xp, whh)


# --------------------------------------------------------------------------
# Parameters (deterministic, synthetic) + forward pass (eval mode)
# --------------------------------------------------------------------------
def _bn_fold(bn, eps=EPS):
    """Eval-mode BatchNorm1d folded to per-channel scale/shift (module eps=1e-12)."""
    g = bn["gamma"] / jnp.sqrt(bn["var"] + eps)
    return g, bn["beta"] - bn["mean"] * g


def init_openunmix_params(key, cfg):
    C = cfg["in_channels"]
    H = cfg["hidden_channels"]
    L = cfg["num_layers"]
    F = cfg["n_bins"]
    Fmax = cfg["max_bin"]
    half = H // 2
    keys = iter(jax.random.split(key, 128))

    def nrm(shape, scale=0.1):
        return scale * jax.random.normal(next(keys), shape, dtype=jnp.float32)

    def bn(dim):
        return dict(gamma=1.0 + nrm((dim,)), beta=nrm((dim,)),
                    mean=nrm((dim,)), var=jnp.abs(1.0 + nrm((dim,))))

    bf16 = jnp.bfloat16
    p = {}
    p["scale_in"] = 1.0 + nrm((Fmax,))
    p["bias_in"] = nrm((Fmax,))
    p["w1"] = nrm((C * Fmax, H)).astype(bf16)          # nn.Linear weight, transposed
    p["bn1"] = bn(H)

    lstm = []
    in_dim = H
    for _ in range(L):
        layer = {}
        for d in ("fwd", "bwd"):
            layer[d] = dict(
                w_ih=nrm((in_dim, 4 * half)).astype(bf16),   # W_ih^T, gate order i,f,g,o
                w_hh=nrm((half, 4 * half)).astype(bf16),     # W_hh^T
                b=nrm((4 * half,)),                          # b_ih + b_hh combined
            )
        lstm.append(layer)
        in_dim = H
    p["lstm"] = lstm

    p["w2"] = nrm((2 * H, H)).astype(bf16)
    p["bn2"] = bn(H)
    p["w3"] = nrm((H, C * F)).astype(bf16)
    p["bn3"] = bn(C * F)
    p["scale_out"] = 1.0 + nrm((F,))
    p["bias_out"] = nrm((F,))
    return p


def openunmix_forward(params, x, cfg):
    """x: (B, C, n_bins, T) -> (B, C, n_bins, T). Eval mode: BN running stats,
    dropout = identity.  # TODO(synk): causal=True (unidirectional LSTM) path not implemented."""
    C = cfg["in_channels"]
    H = cfg["hidden_channels"]
    L = cfg["num_layers"]
    F = cfg["n_bins"]
    Fmax = cfg["max_bin"]
    eps = cfg.get("eps", EPS)
    half = H // 2
    B, _, _, T = x.shape
    N = T * B
    x = x.astype(jnp.float32)

    # Single layout change for the whole net: (B,C,F,T) -> (T,B,C,F) time-major.
    x_tbcf = jnp.transpose(x, (3, 0, 1, 2))                    # (T, B, C, F)
    mix_flat = x_tbcf.reshape(N, C * F)
    mix_bf16 = mix_flat.astype(jnp.bfloat16)                   # halves block3 mask read
    if Fmax < F:
        x_in = x_tbcf[..., :Fmax].reshape(N, C * Fmax)
    else:
        x_in = mix_flat

    # ---- block 1: affine_in + Linear + BN1 + tanh (fused) ----
    col_bias = jnp.tile(params["bias_in"], C).reshape(1, -1)
    col_inv_scale = jnp.tile(1.0 / (jnp.abs(params["scale_in"]) + eps), C).reshape(1, -1)
    g1, b1 = _bn_fold(params["bn1"])
    x_seq = _row_call(_in_block_kernel, [x_in],
                      [col_bias, col_inv_scale, params["w1"],
                       g1.reshape(1, -1), b1.reshape(1, -1)],
                      H)                                        # (N, H) f32

    # ---- bidirectional multi-layer LSTM ----
    t_chunk = _pick_time_chunk(T)
    hdir_flat = None
    for l in range(L):
        pf = params["lstm"][l]["fwd"]
        pb = params["lstm"][l]["bwd"]
        bf = pf["b"].reshape(1, -1)
        bb = pb["b"].reshape(1, -1)
        if l == 0:
            xp = _row_call(_lstm_proj_x_kernel, [x_seq],
                           [pf["w_ih"], pb["w_ih"], bf, bb],
                           4 * half, out_dtype=jnp.bfloat16, out_lead=2)
        else:
            # previous layer's (h_fwd, h_bwd) feed W_ih split by rows (no concat)
            xp = _row_call(_lstm_proj_h_kernel, [hdir_flat],
                           [pf["w_ih"][:half], pf["w_ih"][half:],
                            pb["w_ih"][:half], pb["w_ih"][half:], bf, bb],
                           4 * half, out_dtype=jnp.bfloat16, out_lead=2)
        xp = xp.reshape(2, T, B, 4 * half)                      # free reshape
        whh = jnp.stack([pf["w_hh"], pb["w_hh"]], axis=0)       # (2, half, 4h) bf16
        hdir = bilstm_layer(xp, whh, half=half, t_chunk=t_chunk)  # (2,T,B,half) bf16
        hdir_flat = hdir.reshape(2, N, half)

    # ---- block 2: cat([x_seq, h_f, h_b]) @ W2 as split-K + BN2 + relu ----
    g2, b2 = _bn_fold(params["bn2"])
    y = _row_call(_block2_kernel, [x_seq, hdir_flat],
                  [params["w2"][:H], params["w2"][H:H + half], params["w2"][H + half:],
                   g2.reshape(1, -1), b2.reshape(1, -1)],
                  H, out_dtype=jnp.bfloat16)

    # ---- block 3 fused with affine_out + relu + mask-multiply ----
    # relu(s*(y*g3+b3)+t) * mix == relu(y*(g3*s) + (b3*s+t)) * mix
    g3, b3 = _bn_fold(params["bn3"])
    s_out = jnp.tile(params["scale_out"], C)
    t_out = jnp.tile(params["bias_out"], C)
    g3f = (g3 * s_out).reshape(1, -1)
    b3f = (b3 * s_out + t_out).reshape(1, -1)
    out_flat = _row_call(_block3_kernel, [y, mix_bf16],
                         [params["w3"], g3f, b3f],
                         C * F)                                  # (N, C*F) f32

    return out_flat.reshape(T, B, C, F).transpose(1, 2, 3, 0)    # (B, C, F, T)


class ParallelOpenUnmixPallas:
    """Mirror of ParallelOpenUnmix: dict of OpenUnmix parameter sets, dispatch by target."""

    def __init__(self, params_by_target, cfg):
        self.params = params_by_target
        self.cfg = cfg
        self.in_channels = cfg["in_channels"]
        self._forward = jax.jit(functools.partial(openunmix_forward, cfg=cfg))

    def __call__(self, x, target=None):
        if not isinstance(target, str):
            raise TypeError("`target` is expected str, but given {}".format(type(target)))
        return self._forward(self.params[target], x)


# --------------------------------------------------------------------------
if __name__ == "__main__":
    cfg = dict(in_channels=2, hidden_channels=32, num_layers=2,
               n_bins=16, max_bin=8, causal=False, eps=EPS)

    root_key = jax.random.PRNGKey(0)
    k_in, k_voc, k_drm = jax.random.split(root_key, 3)

    params_by_target = {
        "vocals": init_openunmix_params(k_voc, cfg),
        "drums": init_openunmix_params(k_drm, cfg),
    }
    model = ParallelOpenUnmixPallas(params_by_target, cfg)

    B, C, F, T = 2, cfg["in_channels"], cfg["n_bins"], 8
    # magnitude-spectrogram-like (non-negative) input
    x = jnp.abs(jax.random.normal(k_in, (B, C, F, T), dtype=jnp.float32))

    out = model(x, target="vocals")
    out = jax.block_until_ready(out)

    assert out.shape == (B, C, F, T), out.shape
    assert bool(jnp.all(jnp.isfinite(out)))
    print("KERNEL_OK")
</pallas_src>

<mosaic_0001>
module attributes {stable_mosaic.version = 11 : i64} {
  func.func @_lstm_proj_x_kernel(%arg0: i32, %arg1: memref<16x32xf32, #tpu.memory_space<vmem>>, %arg2: memref<32x64xbf16, #tpu.memory_space<vmem>>, %arg3: memref<32x64xbf16, #tpu.memory_space<vmem>>, %arg4: memref<1x64xf32, #tpu.memory_space<vmem>>, %arg5: memref<1x64xf32, #tpu.memory_space<vmem>>, %arg6: memref<2x16x64xbf16, #tpu.memory_space<vmem>>) attributes {dimension_semantics = [#tpu.dimension_semantics<parallel>], iteration_bounds = array<i64: 1>, scalar_prefetch = 0 : i64, scratch_operands = 0 : i64, tpu.core_type = #tpu.core_type<tc>, window_params = [{transform_indices = @transform_0, window_bounds = array<i64: 16, 32>}, {pipeline_mode = #tpu.pipeline_mode<synchronous>, transform_indices = @transform_1, window_bounds = array<i64: 32, 64>}, {pipeline_mode = #tpu.pipeline_mode<synchronous>, transform_indices = @transform_2, window_bounds = array<i64: 32, 64>}, {pipeline_mode = #tpu.pipeline_mode<synchronous>, transform_indices = @transform_3, window_bounds = array<i64: 1, 64>}, {pipeline_mode = #tpu.pipeline_mode<synchronous>, transform_indices = @transform_4, window_bounds = array<i64: 1, 64>}, {transform_indices = @transform_5, window_bounds = array<i64: 2, 16, 64>}]} {
    %c0 = arith.constant 0 : index
    %c0_0 = arith.constant 0 : index
    %0 = vector.load %arg1[%c0, %c0_0] : memref<16x32xf32, #tpu.memory_space<vmem>>, vector<16x32xf32>
    %1 = arith.truncf %0 : vector<16x32xf32> to vector<16x32xbf16>
    %c0_1 = arith.constant 0 : index
    %c0_2 = arith.constant 0 : index
    %2 = vector.load %arg2[%c0_1, %c0_2] : memref<32x64xbf16, #tpu.memory_space<vmem>>, vector<32x64xbf16>
    %cst = arith.constant dense<0.000000e+00> : vector<16x64xf32>
    %3 = tpu.matmul %1, %2, %cst {dimension_numbers = #tpu.dot_dimension_numbers<[1], [0], [0], [1], [0, 0, 1, 1], [], []>} : vector<16x32xbf16>, vector<32x64xbf16>, vector<16x64xf32> -> vector<16x64xf32>
    %c0_3 = arith.constant 0 : index
    %c0_4 = arith.constant 0 : index
    %4 = vector.load %arg4[%c0_3, %c0_4] : memref<1x64xf32, #tpu.memory_space<vmem>>, vector<1x64xf32>
    %5 = vector.broadcast %4 : vector<1x64xf32> to vector<16x64xf32>
    %6 = arith.addf %3, %5 : vector<16x64xf32>
    %7 = arith.truncf %6 : vector<16x64xf32> to vector<16x64xbf16>
    %c0_5 = arith.constant 0 : index
    %c0_6 = arith.constant 0 : index
    %c0_7 = arith.constant 0 : index
    %8 = vector.load %arg6[%c0_5, %c0_6, %c0_7] : memref<2x16x64xbf16, #tpu.memory_space<vmem>>, vector<1x16x64xbf16>
    %9 = vector.shape_cast %8 : vector<1x16x64xbf16> to vector<16x64xbf16>
    %10 = vector.shape_cast %7 : vector<16x64xbf16> to vector<1x16x64xbf16>
    tpu.vector_store %arg6[%c0_5, %c0_6, %c0_7], %10 {strides = array<i32>} : memref<2x16x64xbf16, #tpu.memory_space<vmem>>, vector<1x16x64xbf16>,
    %c0_8 = arith.constant 0 : index
    %c0_9 = arith.constant 0 : index
    %11 = vector.load %arg3[%c0_8, %c0_9] : memref<32x64xbf16, #tpu.memory_space<vmem>>, vector<32x64xbf16>
    %cst_10 = arith.constant dense<0.000000e+00> : vector<16x64xf32>
    %12 = tpu.matmul %1, %11, %cst_10 {dimension_numbers = #tpu.dot_dimension_numbers<[1], [0], [0], [1], [0, 0, 1, 1], [], []>} : vector<16x32xbf16>, vector<32x64xbf16>, vector<16x64xf32> -> vector<16x64xf32>
    %c0_11 = arith.constant 0 : index
    %c0_12 = arith.constant 0 : index
    %13 = vector.load %arg5[%c0_11, %c0_12] : memref<1x64xf32, #tpu.memory_space<vmem>>, vector<1x64xf32>
    %14 = vector.broadcast %13 : vector<1x64xf32> to vector<16x64xf32>
    %15 = arith.addf %12, %14 : vector<16x64xf32>
    %16 = arith.truncf %15 : vector<16x64xf32> to vector<16x64xbf16>
    %c1 = arith.constant 1 : index
    %c0_13 = arith.constant 0 : index
    %c0_14 = arith.constant 0 : index
    %17 = vector.load %arg6[%c1, %c0_13, %c0_14] : memref<2x16x64xbf16, #tpu.memory_space<vmem>>, vector<1x16x64xbf16>
    %18 = vector.shape_cast %17 : vector<1x16x64xbf16> to vector<16x64xbf16>
    %19 = vector.shape_cast %16 : vector<16x64xbf16> to vector<1x16x64xbf16>
    tpu.vector_store %arg6[%c1, %c0_13, %c0_14], %19 {strides = array<i32>} : memref<2x16x64xbf16, #tpu.memory_space<vmem>>, vector<1x16x64xbf16>,
    return
  }
  func.func @transform_0(%arg0: i32) -> (i32, i32) {
    %c0_i32 = arith.constant 0 : i32
    %c0_i32_0 = arith.constant 0 : i32
    return %arg0, %c0_i32 : i32, i32
  }
  func.func @transform_1(%arg0: i32) -> (i32, i32) {
    %c0_i32 = arith.constant 0 : i32
    %c0_i32_0 = arith.constant 0 : i32
    %c0_i32_1 = arith.constant 0 : i32
    return %c0_i32, %c0_i32_0 : i32, i32
  }
  func.func @transform_2(%arg0: i32) -> (i32, i32) {
    %c0_i32 = arith.constant 0 : i32
    %c0_i32_0 = arith.constant 0 : i32
    %c0_i32_1 = arith.constant 0 : i32
    return %c0_i32, %c0_i32_0 : i32, i32
  }
  func.func @transform_3(%arg0: i32) -> (i32, i32) {
    %c0_i32 = arith.constant 0 : i32
    %c0_i32_0 = arith.constant 0 : i32
    %c0_i32_1 = arith.constant 0 : i32
    return %c0_i32, %c0_i32_0 : i32, i32
  }
  func.func @transform_4(%arg0: i32) -> (i32, i32) {
    %c0_i32 = arith.constant 0 : i32
    %c0_i32_0 = arith.constant 0 : i32
    %c0_i32_1 = arith.constant 0 : i32
    return %c0_i32, %c0_i32_0 : i32, i32
  }
  func.func @transform_5(%arg0: i32) -> (i32, i32, i32) {
    %c0_i32 = arith.constant 0 : i32
    %c0_i32_0 = arith.constant 0 : i32
    %c0_i32_1 = arith.constant 0 : i32
    return %c0_i32, %arg0, %c0_i32_0 : i32, i32, i32
  }
}

module attributes {stable_mosaic.version = 11 : i64} {
  func.func @_in_block_kernel(%arg0: i32, %arg1: memref<16x16xf32, #tpu.memory_space<vmem>>, %arg2: memref<1x16xf32, #tpu.memory_space<vmem>>, %arg3: memref<1x16xf32, #tpu.memory_space<vmem>>, %arg4: memref<16x32xbf16, #tpu.memory_space<vmem>>, %arg5: memref<1x32xf32, #tpu.memory_space<vmem>>, %arg6: memref<1x32xf32, #tpu.memory_space<vmem>>, %arg7: memref<16x32xf32, #tpu.memory_space<vmem>>) attributes {dimension_semantics = [#tpu.dimension_semantics<parallel>], iteration_bounds = array<i64: 1>, scalar_prefetch = 0 : i64, scratch_operands = 0 : i64, tpu.core_type = #tpu.core_type<tc>, window_params = [{transform_indices = @transform_0, window_bounds = array<i64: 16, 16>}, {pipeline_mode = #tpu.pipeline_mode<synchronous>, transform_indices = @transform_1, window_bounds = array<i64: 1, 16>}, {pipeline_mode = #tpu.pipeline_mode<synchronous>, transform_indices = @transform_2, window_bounds = array<i64: 1, 16>}, {pipeline_mode = #tpu.pipeline_mode<synchronous>, transform_indices = @transform_3, window_bounds = array<i64: 16, 32>}, {pipeline_mode = #tpu.pipeline_mode<synchronous>, transform_indices = @transform_4, window_bounds = array<i64: 1, 32>}, {pipeline_mode = #tpu.pipeline_mode<synchronous>, transform_indices = @transform_5, window_bounds = array<i64: 1, 32>}, {transform_indices = @transform_6, window_bounds = array<i64: 16, 32>}]} {
    %c0 = arith.constant 0 : index
    %c0_0 = arith.constant 0 : index
    %0 = vector.load %arg1[%c0, %c0_0] : memref<16x16xf32, #tpu.memory_space<vmem>>, vector<16x16xf32>
    %c0_1 = arith.constant 0 : index
    %c0_2 = arith.constant 0 : index
    %1 = vector.load %arg2[%c0_1, %c0_2] : memref<1x16xf32, #tpu.memory_space<vmem>>, vector<1x16xf32>
    %2 = vector.broadcast %1 : vector<1x16xf32> to vector<16x16xf32>
    %3 = arith.subf %0, %2 : vector<16x16xf32>
    %c0_3 = arith.constant 0 : index
    %c0_4 = arith.constant 0 : index
    %4 = vector.load %arg3[%c0_3, %c0_4] : memref<1x16xf32, #tpu.memory_space<vmem>>, vector<1x16xf32>
    %5 = vector.broadcast %4 : vector<1x16xf32> to vector<16x16xf32>
    %6 = arith.mulf %3, %5 : vector<16x16xf32>
    %7 = arith.truncf %6 : vector<16x16xf32> to vector<16x16xbf16>
    %c0_5 = arith.constant 0 : index
    %c0_6 = arith.constant 0 : index
    %8 = vector.load %arg4[%c0_5, %c0_6] : memref<16x32xbf16, #tpu.memory_space<vmem>>, vector<16x32xbf16>
    %cst = arith.constant dense<0.000000e+00> : vector<16x32xf32>
    %9 = tpu.matmul %7, %8, %cst {dimension_numbers = #tpu.dot_dimension_numbers<[1], [0], [0], [1], [0, 0, 1, 1], [], []>} : vector<16x16xbf16>, vector<16x32xbf16>, vector<16x32xf32> -> vector<16x32xf32>
    %c0_7 = arith.constant 0 : index
    %c0_8 = arith.constant 0 : index
    %10 = vector.load %arg5[%c0_7, %c0_8] : memref<1x32xf32, #tpu.memory_space<vmem>>, vector<1x32xf32>
    %11 = vector.broadcast %10 : vector<1x32xf32> to vector<16x32xf32>
    %12 = arith.mulf %9, %11 : vector<16x32xf32>
    %c0_9 = arith.constant 0 : index
    %c0_10 = arith.constant 0 : index
    %13 = vector.load %arg6[%c0_9, %c0_10] : memref<1x32xf32, #tpu.memory_space<vmem>>, vector<1x32xf32>
    %14 = vector.broadcast %13 : vector<1x32xf32> to vector<16x32xf32>
    %15 = arith.addf %12, %14 : vector<16x32xf32>
    %16 = math.tanh %15 : vector<16x32xf32>
    %c0_11 = arith.constant 0 : index
    %c0_12 = arith.constant 0 : index
    %17 = vector.load %arg7[%c0_11, %c0_12] : memref<16x32xf32, #tpu.memory_space<vmem>>, vector<16x32xf32>
    tpu.vector_store %arg7[%c0_11, %c0_12], %16 {strides = array<i32>} : memref<16x32xf32, #tpu.memory_space<vmem>>, vector<16x32xf32>,
    return
  }
  func.func @transform_0(%arg0: i32) -> (i32, i32) {
    %c0_i32 = arith.constant 0 : i32
    %c0_i32_0 = arith.constant 0 : i32
    return %arg0, %c0_i32 : i32, i32
  }
  func.func @transform_1(%arg0: i32) -> (i32, i32) {
    %c0_i32 = arith.constant 0 : i32
    %c0_i32_0 = arith.constant 0 : i32
    %c0_i32_1 = arith.constant 0 : i32
    return %c0_i32, %c0_i32_0 : i32, i32
  }
  func.func @transform_2(%arg0: i32) -> (i32, i32) {
    %c0_i32 = arith.constant 0 : i32
    %c0_i32_0 = arith.constant 0 : i32
    %c0_i32_1 = arith.constant 0 : i32
    return %c0_i32, %c0_i32_0 : i32, i32
  }
  func.func @transform_3(%arg0: i32) -> (i32, i32) {
    %c0_i32 = arith.constant 0 : i32
    %c0_i32_0 = arith.constant 0 : i32
    %c0_i32_1 = arith.constant 0 : i32
    return %c0_i32, %c0_i32_0 : i32, i32
  }
  func.func @transform_4(%arg0: i32) -> (i32, i32) {
    %c0_i32 = arith.constant 0 : i32
    %c0_i32_0 = arith.constant 0 : i32
    %c0_i32_1 = arith.constant 0 : i32
    return %c0_i32, %c0_i32_0 : i32, i32
  }
  func.func @transform_5(%arg0: i32) -> (i32, i32) {
    %c0_i32 = arith.constant 0 : i32
    %c0_i32_0 = arith.constant 0 : i32
    %c0_i32_1 = arith.constant 0 : i32
    return %c0_i32, %c0_i32_0 : i32, i32
  }
  func.func @transform_6(%arg0: i32) -> (i32, i32) {
    %c0_i32 = arith.constant 0 : i32
    %c0_i32_0 = arith.constant 0 : i32
    return %arg0, %c0_i32 : i32, i32
  }
}

module attributes {stable_mosaic.version = 11 : i64} {
  func.func @_lstm_proj_h_kernel(%arg0: i32, %arg1: memref<2x16x16xbf16, #tpu.memory_space<vmem>>, %arg2: memref<16x64xbf16, #tpu.memory_space<vmem>>, %arg3: memref<16x64xbf16, #tpu.memory_space<vmem>>, %arg4: memref<16x64xbf16, #tpu.memory_space<vmem>>, %arg5: memref<16x64xbf16, #tpu.memory_space<vmem>>, %arg6: memref<1x64xf32, #tpu.memory_space<vmem>>, %arg7: memref<1x64xf32, #tpu.memory_space<vmem>>, %arg8: memref<2x16x64xbf16, #tpu.memory_space<vmem>>) attributes {dimension_semantics = [#tpu.dimension_semantics<parallel>], iteration_bounds = array<i64: 1>, scalar_prefetch = 0 : i64, scratch_operands = 0 : i64, tpu.core_type = #tpu.core_type<tc>, window_params = [{transform_indices = @transform_0, window_bounds = array<i64: 2, 16, 16>}, {pipeline_mode = #tpu.pipeline_mode<synchronous>, transform_indices = @transform_1, window_bounds = array<i64: 16, 64>}, {pipeline_mode = #tpu.pipeline_mode<synchronous>, transform_indices = @transform_2, window_bounds = array<i64: 16, 64>}, {pipeline_mode = #tpu.pipeline_mode<synchronous>, transform_indices = @transform_3, window_bounds = array<i64: 16, 64>}, {pipeline_mode = #tpu.pipeline_mode<synchronous>, transform_indices = @transform_4, window_bounds = array<i64: 16, 64>}, {pipeline_mode = #tpu.pipeline_mode<synchronous>, transform_indices = @transform_5, window_bounds = array<i64: 1, 64>}, {pipeline_mode = #tpu.pipeline_mode<synchronous>, transform_indices = @transform_6, window_bounds = array<i64: 1, 64>}, {transform_indices = @transform_7, window_bounds = array<i64: 2, 16, 64>}]} {
    %c0 = arith.constant 0 : index
    %c0_0 = arith.constant 0 : index
    %c0_1 = arith.constant 0 : index
    %0 = vector.load %arg1[%c0, %c0_0, %c0_1] : memref<2x16x16xbf16, #tpu.memory_space<vmem>>, vector<1x16x16xbf16>
    %1 = vector.shape_cast %0 : vector<1x16x16xbf16> to vector<16x16xbf16>
    %c1 = arith.constant 1 : index
    %c0_2 = arith.constant 0 : index
    %c0_3 = arith.constant 0 : index
    %2 = vector.load %arg1[%c1, %c0_2, %c0_3] : memref<2x16x16xbf16, #tpu.memory_space<vmem>>, vector<1x16x16xbf16>
    %3 = vector.shape_cast %2 : vector<1x16x16xbf16> to vector<16x16xbf16>
    %c0_4 = arith.constant 0 : index
    %c0_5 = arith.constant 0 : index
    %4 = vector.load %arg2[%c0_4, %c0_5] : memref<16x64xbf16, #tpu.memory_space<vmem>>, vector<16x64xbf16>
    %cst = arith.constant dense<0.000000e+00> : vector<16x64xf32>
    %5 = tpu.matmul %1, %4, %cst {dimension_numbers = #tpu.dot_dimension_numbers<[1], [0], [0], [1], [0, 0, 1, 1], [], []>} : vector<16x16xbf16>, vector<16x64xbf16>, vector<16x64xf32> -> vector<16x64xf32>
    %c0_6 = arith.constant 0 : index
    %c0_7 = arith.constant 0 : index
    %6 = vector.load %arg3[%c0_6, %c0_7] : memref<16x64xbf16, #tpu.memory_space<vmem>>, vector<16x64xbf16>
    %cst_8 = arith.constant dense<0.000000e+00> : vector<16x64xf32>
    %7 = tpu.matmul %3, %6, %cst_8 {dimension_numbers = #tpu.dot_dimension_numbers<[1], [0], [0], [1], [0, 0, 1, 1], [], []>} : vector<16x16xbf16>, vector<16x64xbf16>, vector<16x64xf32> -> vector<16x64xf32>
    %8 = arith.addf %5, %7 : vector<16x64xf32>
    %c0_9 = arith.constant 0 : index
    %c0_10 = arith.constant 0 : index
    %9 = vector.load %arg6[%c0_9, %c0_10] : memref<1x64xf32, #tpu.memory_space<vmem>>, vector<1x64xf32>
    %10 = vector.broadcast %9 : vector<1x64xf32> to vector<16x64xf32>
    %11 = arith.addf %8, %10 : vector<16x64xf32>
    %c0_11 = arith.constant 0 : index
    %c0_12 = arith.constant 0 : index
    %12 = vector.load %arg4[%c0_11, %c0_12] : memref<16x64xbf16, #tpu.memory_space<vmem>>, vector<16x64xbf16>
    %cst_13 = arith.constant dense<0.000000e+00> : vector<16x64xf32>
    %13 = tpu.matmul %1, %12, %cst_13 {dimension_numbers = #tpu.dot_dimension_numbers<[1], [0], [0], [1], [0, 0, 1, 1], [], []>} : vector<16x16xbf16>, vector<16x64xbf16>, vector<16x64xf32> -> vector<16x64xf32>
    %c0_14 = arith.constant 0 : index
    %c0_15 = arith.constant 0 : index
    %14 = vector.load %arg5[%c0_14, %c0_15] : memref<16x64xbf16, #tpu.memory_space<vmem>>, vector<16x64xbf16>
    %cst_16 = arith.constant dense<0.000000e+00> : vector<16x64xf32>
    %15 = tpu.matmul %3, %14, %cst_16 {dimension_numbers = #tpu.dot_dimension_numbers<[1], [0], [0], [1], [0, 0, 1, 1], [], []>} : vector<16x16xbf16>, vector<16x64xbf16>, vector<16x64xf32> -> vector<16x64xf32>
    %16 = arith.addf %13, %15 : vector<16x64xf32>
    %c0_17 = arith.constant 0 : index
    %c0_18 = arith.constant 0 : index
    %17 = vector.load %arg7[%c0_17, %c0_18] : memref<1x64xf32, #tpu.memory_space<vmem>>, vector<1x64xf32>
    %18 = vector.broadcast %17 : vector<1x64xf32> to vector<16x64xf32>
    %19 = arith.addf %16, %18 : vector<16x64xf32>
    %20 = arith.truncf %11 : vector<16x64xf32> to vector<16x64xbf16>
    %c0_19 = arith.constant 0 : index
    %c0_20 = arith.constant 0 : index
    %c0_21 = arith.constant 0 : index
    %21 = vector.load %arg8[%c0_19, %c0_20, %c0_21] : memref<2x16x64xbf16, #tpu.memory_space<vmem>>, vector<1x16x64xbf16>
    %22 = vector.shape_cast %21 : vector<1x16x64xbf16> to vector<16x64xbf16>
    %23 = vector.shape_cast %20 : vector<16x64xbf16> to vector<1x16x64xbf16>
    tpu.vector_store %arg8[%c0_19, %c0_20, %c0_21], %23 {strides = array<i32>} : memref<2x16x64xbf16, #tpu.memory_space<vmem>>, vector<1x16x64xbf16>,
    %24 = arith.truncf %19 : vector<16x64xf32> to vector<16x64xbf16>
    %c1_22 = arith.constant 1 : index
    %c0_23 = arith.constant 0 : index
    %c0_24 = arith.constant 0 : index
    %25 = vector.load %arg8[%c1_22, %c0_23, %c0_24] : memref<2x16x64xbf16, #tpu.memory_space<vmem>>, vector<1x16x64xbf16>
    %26 = vector.shape_cast %25 : vector<1x16x64xbf16> to vector<16x64xbf16>
    %27 = vector.shape_cast %24 : vector<16x64xbf16> to vector<1x16x64xbf16>
    tpu.vector_store %arg8[%c1_22, %c0_23, %c0_24], %27 {strides = array<i32>} : memref<2x16x64xbf16, #tpu.memory_space<vmem>>, vector<1x16x64xbf16>,
    return
  }
  func.func @transform_0(%arg0: i32) -> (i32, i32, i32) {
    %c0_i32 = arith.constant 0 : i32
    %c0_i32_0 = arith.constant 0 : i32
    %c0_i32_1 = arith.constant 0 : i32
    return %c0_i32, %arg0, %c0_i32_0 : i32, i32, i32
  }
  func.func @transform_1(%arg0: i32) -> (i32, i32) {
    %c0_i32 = arith.constant 0 : i32
    %c0_i32_0 = arith.constant 0 : i32
    %c0_i32_1 = arith.constant 0 : i32
    return %c0_i32, %c0_i32_0 : i32, i32
  }
  func.func @transform_2(%arg0: i32) -> (i32, i32) {
    %c0_i32 = arith.constant 0 : i32
    %c0_i32_0 = arith.constant 0 : i32
    %c0_i32_1 = arith.constant 0 : i32
    return %c0_i32, %c0_i32_0 : i32, i32
  }
  func.func @transform_3(%arg0: i32) -> (i32, i32) {
    %c0_i32 = arith.constant 0 : i32
    %c0_i32_0 = arith.constant 0 : i32
    %c0_i32_1 = arith.constant 0 : i32
    return %c0_i32, %c0_i32_0 : i32, i32
  }
  func.func @transform_4(%arg0: i32) -> (i32, i32) {
    %c0_i32 = arith.constant 0 : i32
    %c0_i32_0 = arith.constant 0 : i32
    %c0_i32_1 = arith.constant 0 : i32
    return %c0_i32, %c0_i32_0 : i32, i32
  }
  func.func @transform_5(%arg0: i32) -> (i32, i32) {
    %c0_i32 = arith.constant 0 : i32
    %c0_i32_0 = arith.constant 0 : i32
    %c0_i32_1 = arith.constant 0 : i32
    return %c0_i32, %c0_i32_0 : i32, i32
  }
  func.func @transform_6(%arg0: i32) -> (i32, i32) {
    %c0_i32 = arith.constant 0 : i32
    %c0_i32_0 = arith.constant 0 : i32
    %c0_i32_1 = arith.constant 0 : i32
    return %c0_i32, %c0_i32_0 : i32, i32
  }
  func.func @transform_7(%arg0: i32) -> (i32, i32, i32) {
    %c0_i32 = arith.constant 0 : i32
    %c0_i32_0 = arith.constant 0 : i32
    %c0_i32_1 = arith.constant 0 : i32
    return %c0_i32, %arg0, %c0_i32_0 : i32, i32, i32
  }
}

module attributes {stable_mosaic.version = 11 : i64} {
  func.func @_bilstm_chunk_kernel(%arg0: i32, %arg1: i32, %arg2: memref<1x8x2x64xbf16, #tpu.memory_space<vmem>>, %arg3: memref<1x16x64xbf16, #tpu.memory_space<vmem>>, %arg4: memref<1x8x2x16xbf16, #tpu.memory_space<vmem>>, %arg5: memref<2x16xf32, #tpu.memory_space<vmem>>, %arg6: memref<2x16xf32, #tpu.memory_space<vmem>>) attributes {dimension_semantics = [#tpu.dimension_semantics<parallel>, #tpu.dimension_semantics<arbitrary>], iteration_bounds = array<i64: 2, 1>, scalar_prefetch = 0 : i64, scratch_operands = 2 : i64, tpu.core_type = #tpu.core_type<tc>, window_params = [{transform_indices = @transform_0, window_bounds = array<i64: 1, 8, 2, 64>}, {transform_indices = @transform_1, window_bounds = array<i64: 1, 16, 64>}, {transform_indices = @transform_2, window_bounds = array<i64: 1, 8, 2, 16>}]} {
    %c0_i32 = arith.constant 0 : i32
    %0 = arith.cmpi eq, %arg1, %c0_i32 : i32
    %1 = arith.extui %0 : i1 to i32
    %c0_i32_0 = arith.constant 0 : i32
    %2 = arith.cmpi ne, %1, %c0_i32_0 : i32
    scf.if %2 {
      %cst_115 = arith.constant 0.000000e+00 : f32
      %345 = vector.broadcast %cst_115 : f32 to vector<2x16xf32>
      %c0_116 = arith.constant 0 : index
      %c0_117 = arith.constant 0 : index
      %346 = vector.load %arg5[%c0_116, %c0_117] : memref<2x16xf32, #tpu.memory_space<vmem>>, vector<2x16xf32>
      tpu.vector_store %arg5[%c0_116, %c0_117], %345 {strides = array<i32>} : memref<2x16xf32, #tpu.memory_space<vmem>>, vector<2x16xf32>,
      %cst_118 = arith.constant 0.000000e+00 : f32
      %347 = vector.broadcast %cst_118 : f32 to vector<2x16xf32>
      %c0_119 = arith.constant 0 : index
      %c0_120 = arith.constant 0 : index
      %348 = vector.load %arg6[%c0_119, %c0_120] : memref<2x16xf32, #tpu.memory_space<vmem>>, vector<2x16xf32>
      tpu.vector_store %arg6[%c0_119, %c0_120], %347 {strides = array<i32>} : memref<2x16xf32, #tpu.memory_space<vmem>>, vector<2x16xf32>,
    } else {
    }
    %c0 = arith.constant 0 : index
    %c0_1 = arith.constant 0 : index
    %c0_2 = arith.constant 0 : index
    %3 = vector.load %arg3[%c0, %c0_1, %c0_2] : memref<1x16x64xbf16, #tpu.memory_space<vmem>>, vector<1x16x64xbf16>
    %4 = vector.shape_cast %3 : vector<1x16x64xbf16> to vector<16x64xbf16>
    %c0_3 = arith.constant 0 : index
    %c0_4 = arith.constant 0 : index
    %5 = vector.load %arg5[%c0_3, %c0_4] : memref<2x16xf32, #tpu.memory_space<vmem>>, vector<2x16xf32>
    %c0_5 = arith.constant 0 : index
    %c0_6 = arith.constant 0 : index
    %6 = vector.load %arg6[%c0_5, %c0_6] : memref<2x16xf32, #tpu.memory_space<vmem>>, vector<2x16xf32>
    %c0_i32_7 = arith.constant 0 : i32
    %c7_i32 = arith.constant 7 : i32
    %7 = arith.muli %arg0, %c7_i32 : i32
    %c2_i32 = arith.constant 2 : i32
    %8 = arith.muli %c2_i32, %arg0 : i32
    %c1_i32 = arith.constant 1 : i32
    %9 = arith.subi %c1_i32, %8 : i32
    %10 = arith.muli %9, %c0_i32_7 : i32
    %11 = arith.addi %7, %10 : i32
    %c0_8 = arith.constant 0 : index
    %12 = arith.index_cast %11 : i32 to index
    %c0_9 = arith.constant 0 : index
    %c0_10 = arith.constant 0 : index
    %13 = vector.load %arg2[%c0_8, %12, %c0_9, %c0_10] : memref<1x8x2x64xbf16, #tpu.memory_space<vmem>>, vector<1x1x2x64xbf16>
    %14 = vector.shape_cast %13 : vector<1x1x2x64xbf16> to vector<2x64xbf16>
    %15 = arith.extf %14 : vector<2x64xbf16> to vector<2x64xf32>
    %16 = arith.truncf %5 : vector<2x16xf32> to vector<2x16xbf16>
    %cst = arith.constant dense<0.000000e+00> : vector<2x64xf32>
    %17 = tpu.matmul %16, %4, %cst {dimension_numbers = #tpu.dot_dimension_numbers<[1], [0], [0], [1], [0, 0, 1, 1], [], []>} : vector<2x16xbf16>, vector<16x64xbf16>, vector<2x64xf32> -> vector<2x64xf32>
    %18 = arith.addf %15, %17 : vector<2x64xf32>
    %19 = vector.extract_strided_slice %18 {offsets = [0, 0], sizes = [2, 16], strides = [1, 1]} : vector<2x64xf32> to vector<2x16xf32>
    %20 = arith.negf %19 : vector<2x16xf32>
    %21 = math.exp %20 : vector<2x16xf32>
    %cst_11 = arith.constant 1.000000e+00 : f32
    %22 = vector.broadcast %cst_11 : f32 to vector<2x16xf32>
    %23 = arith.addf %22, %21 : vector<2x16xf32>
    %24 = arith.divf %22, %23 : vector<2x16xf32>
    %25 = vector.extract_strided_slice %18 {offsets = [0, 16], sizes = [2, 16], strides = [1, 1]} : vector<2x64xf32> to vector<2x16xf32>
    %26 = arith.negf %25 : vector<2x16xf32>
    %27 = math.exp %26 : vector<2x16xf32>
    %cst_12 = arith.constant 1.000000e+00 : f32
    %28 = vector.broadcast %cst_12 : f32 to vector<2x16xf32>
    %29 = arith.addf %28, %27 : vector<2x16xf32>
    %30 = arith.divf %28, %29 : vector<2x16xf32>
    %31 = vector.extract_strided_slice %18 {offsets = [0, 32], sizes = [2, 16], strides = [1, 1]} : vector<2x64xf32> to vector<2x16xf32>
    %32 = math.tanh %31 : vector<2x16xf32>
    %33 = vector.extract_strided_slice %18 {offsets = [0, 48], sizes = [2, 16], strides = [1, 1]} : vector<2x64xf32> to vector<2x16xf32>
    %34 = arith.negf %33 : vector<2x16xf32>
    %35 = math.exp %34 : vector<2x16xf32>
    %cst_13 = arith.constant 1.000000e+00 : f32
    %36 = vector.broadcast %cst_13 : f32 to vector<2x16xf32>
    %37 = arith.addf %36, %35 : vector<2x16xf32>
    %38 = arith.divf %36, %37 : vector<2x16xf32>
    %39 = arith.mulf %30, %6 : vector<2x16xf32>
    %40 = arith.mulf %24, %32 : vector<2x16xf32>
    %41 = arith.addf %39, %40 : vector<2x16xf32>
    %42 = math.tanh %41 : vector<2x16xf32>
    %43 = arith.mulf %38, %42 : vector<2x16xf32>
    %44 = arith.truncf %43 : vector<2x16xf32> to vector<2x16xbf16>
    %c0_14 = arith.constant 0 : index
    %45 = arith.index_cast %11 : i32 to index
    %c0_15 = arith.constant 0 : index
    %c0_16 = arith.constant 0 : index
    %46 = vector.load %arg4[%c0_14, %45, %c0_15, %c0_16] : memref<1x8x2x16xbf16, #tpu.memory_space<vmem>>, vector<1x1x2x16xbf16>
    %47 = vector.shape_cast %46 : vector<1x1x2x16xbf16> to vector<2x16xbf16>
    %48 = vector.shape_cast %44 : vector<2x16xbf16> to vector<1x1x2x16xbf16>
    tpu.vector_store %arg4[%c0_14, %45, %c0_15, %c0_16], %48 {strides = array<i32>} : memref<1x8x2x16xbf16, #tpu.memory_space<vmem>>, vector<1x1x2x16xbf16>,
    %c1_i32_17 = arith.constant 1 : i32
    %c7_i32_18 = arith.constant 7 : i32
    %49 = arith.muli %arg0, %c7_i32_18 : i32
    %c2_i32_19 = arith.constant 2 : i32
    %50 = arith.muli %c2_i32_19, %arg0 : i32
    %c1_i32_20 = arith.constant 1 : i32
    %51 = arith.subi %c1_i32_20, %50 : i32
    %52 = arith.muli %51, %c1_i32_17 : i32
    %53 = arith.addi %49, %52 : i32
    %c0_21 = arith.constant 0 : index
    %54 = arith.index_cast %53 : i32 to index
    %c0_22 = arith.constant 0 : index
    %c0_23 = arith.constant 0 : index
    %55 = vector.load %arg2[%c0_21, %54, %c0_22, %c0_23] : memref<1x8x2x64xbf16, #tpu.memory_space<vmem>>, vector<1x1x2x64xbf16>
    %56 = vector.shape_cast %55 : vector<1x1x2x64xbf16> to vector<2x64xbf16>
    %57 = arith.extf %56 : vector<2x64xbf16> to vector<2x64xf32>
    %58 = arith.truncf %43 : vector<2x16xf32> to vector<2x16xbf16>
    %cst_24 = arith.constant dense<0.000000e+00> : vector<2x64xf32>
    %59 = tpu.matmul %58, %4, %cst_24 {dimension_numbers = #tpu.dot_dimension_numbers<[1], [0], [0], [1], [0, 0, 1, 1], [], []>} : vector<2x16xbf16>, vector<16x64xbf16>, vector<2x64xf32> -> vector<2x64xf32>
    %60 = arith.addf %57, %59 : vector<2x64xf32>
    %61 = vector.extract_strided_slice %60 {offsets = [0, 0], sizes = [2, 16], strides = [1, 1]} : vector<2x64xf32> to vector<2x16xf32>
    %62 = arith.negf %61 : vector<2x16xf32>
    %63 = math.exp %62 : vector<2x16xf32>
    %cst_25 = arith.constant 1.000000e+00 : f32
    %64 = vector.broadcast %cst_25 : f32 to vector<2x16xf32>
    %65 = arith.addf %64, %63 : vector<2x16xf32>
    %66 = arith.divf %64, %65 : vector<2x16xf32>
    %67 = vector.extract_strided_slice %60 {offsets = [0, 16], sizes = [2, 16], strides = [1, 1]} : vector<2x64xf32> to vector<2x16xf32>
    %68 = arith.negf %67 : vector<2x16xf32>
    %69 = math.exp %68 : vector<2x16xf32>
    %cst_26 = arith.constant 1.000000e+00 : f32
    %70 = vector.broadcast %cst_26 : f32 to vector<2x16xf32>
    %71 = arith.addf %70, %69 : vector<2x16xf32>
    %72 = arith.divf %70, %71 : vector<2x16xf32>
    %73 = vector.extract_strided_slice %60 {offsets = [0, 32], sizes = [2, 16], strides = [1, 1]} : vector<2x64xf32> to vector<2x16xf32>
    %74 = math.tanh %73 : vector<2x16xf32>
    %75 = vector.extract_strided_slice %60 {offsets = [0, 48], sizes = [2, 16], strides = [1, 1]} : vector<2x64xf32> to vector<2x16xf32>
    %76 = arith.negf %75 : vector<2x16xf32>
    %77 = math.exp %76 : vector<2x16xf32>
    %cst_27 = arith.constant 1.000000e+00 : f32
    %78 = vector.broadcast %cst_27 : f32 to vector<2x16xf32>
    %79 = arith.addf %78, %77 : vector<2x16xf32>
    %80 = arith.divf %78, %79 : vector<2x16xf32>
    %81 = arith.mulf %72, %41 : vector<2x16xf32>
    %82 = arith.mulf %66, %74 : vector<2x16xf32>
    %83 = arith.addf %81, %82 : vector<2x16xf32>
    %84 = math.tanh %83 : vector<2x16xf32>
    %85 = arith.mulf %80, %84 : vector<2x16xf32>
    %86 = arith.truncf %85 : vector<2x16xf32> to vector<2x16xbf16>
    %c0_28 = arith.constant 0 : index
    %87 = arith.index_cast %53 : i32 to index
    %c0_29 = arith.constant 0 : index
    %c0_30 = arith.constant 0 : index
    %88 = vector.load %arg4[%c0_28, %87, %c0_29, %c0_30] : memref<1x8x2x16xbf16, #tpu.memory_space<vmem>>, vector<1x1x2x16xbf16>
    %89 = vector.shape_cast %88 : vector<1x1x2x16xbf16> to vector<2x16xbf16>
    %90 = vector.shape_cast %86 : vector<2x16xbf16> to vector<1x1x2x16xbf16>
    tpu.vector_store %arg4[%c0_28, %87, %c0_29, %c0_30], %90 {strides = array<i32>} : memref<1x8x2x16xbf16, #tpu.memory_space<vmem>>, vector<1x1x2x16xbf16>,
    %c2_i32_31 = arith.constant 2 : i32
    %c7_i32_32 = arith.constant 7 : i32
    %91 = arith.muli %arg0, %c7_i32_32 : i32
    %c2_i32_33 = arith.constant 2 : i32
    %92 = arith.muli %c2_i32_33, %arg0 : i32
    %c1_i32_34 = arith.constant 1 : i32
    %93 = arith.subi %c1_i32_34, %92 : i32
    %94 = arith.muli %93, %c2_i32_31 : i32
    %95 = arith.addi %91, %94 : i32
    %c0_35 = arith.constant 0 : index
    %96 = arith.index_cast %95 : i32 to index
    %c0_36 = arith.constant 0 : index
    %c0_37 = arith.constant 0 : index
    %97 = vector.load %arg2[%c0_35, %96, %c0_36, %c0_37] : memref<1x8x2x64xbf16, #tpu.memory_space<vmem>>, vector<1x1x2x64xbf16>
    %98 = vector.shape_cast %97 : vector<1x1x2x64xbf16> to vector<2x64xbf16>
    %99 = arith.extf %98 : vector<2x64xbf16> to vector<2x64xf32>
    %100 = arith.truncf %85 : vector<2x16xf32> to vector<2x16xbf16>
    %cst_38 = arith.constant dense<0.000000e+00> : vector<2x64xf32>
    %101 = tpu.matmul %100, %4, %cst_38 {dimension_numbers = #tpu.dot_dimension_numbers<[1], [0], [0], [1], [0, 0, 1, 1], [], []>} : vector<2x16xbf16>, vector<16x64xbf16>, vector<2x64xf32> -> vector<2x64xf32>
    %102 = arith.addf %99, %101 : vector<2x64xf32>
    %103 = vector.extract_strided_slice %102 {offsets = [0, 0], sizes = [2, 16], strides = [1, 1]} : vector<2x64xf32> to vector<2x16xf32>
    %104 = arith.negf %103 : vector<2x16xf32>
    %105 = math.exp %104 : vector<2x16xf32>
    %cst_39 = arith.constant 1.000000e+00 : f32
    %106 = vector.broadcast %cst_39 : f32 to vector<2x16xf32>
    %107 = arith.addf %106, %105 : vector<2x16xf32>
    %108 = arith.divf %106, %107 : vector<2x16xf32>
    %109 = vector.extract_strided_slice %102 {offsets = [0, 16], sizes = [2, 16], strides = [1, 1]} : vector<2x64xf32> to vector<2x16xf32>
    %110 = arith.negf %109 : vector<2x16xf32>
    %111 = math.exp %110 : vector<2x16xf32>
    %cst_40 = arith.constant 1.000000e+00 : f32
    %112 = vector.broadcast %cst_40 : f32 to vector<2x16xf32>
    %113 = arith.addf %112, %111 : vector<2x16xf32>
    %114 = arith.divf %112, %113 : vector<2x16xf32>
    %115 = vector.extract_strided_slice %102 {offsets = [0, 32], sizes = [2, 16], strides = [1, 1]} : vector<2x64xf32> to vector<2x16xf32>
    %116 = math.tanh %115 : vector<2x16xf32>
    %117 = vector.extract_strided_slice %102 {offsets = [0, 48], sizes = [2, 16], strides = [1, 1]} : vector<2x64xf32> to vector<2x16xf32>
    %118 = arith.negf %117 : vector<2x16xf32>
    %119 = math.exp %118 : vector<2x16xf32>
    %cst_41 = arith.constant 1.000000e+00 : f32
    %120 = vector.broadcast %cst_41 : f32 to vector<2x16xf32>
    %121 = arith.addf %120, %119 : vector<2x16xf32>
    %122 = arith.divf %120, %121 : vector<2x16xf32>
    %123 = arith.mulf %114, %83 : vector<2x16xf32>
    %124 = arith.mulf %108, %116 : vector<2x16xf32>
    %125 = arith.addf %123, %124 : vector<2x16xf32>
    %126 = math.tanh %125 : vector<2x16xf32>
    %127 = arith.mulf %122, %126 : vector<2x16xf32>
    %128 = arith.truncf %127 : vector<2x16xf32> to vector<2x16xbf16>
    %c0_42 = arith.constant 0 : index
    %129 = arith.index_cast %95 : i32 to index
    %c0_43 = arith.constant 0 : index
    %c0_44 = arith.constant 0 : index
    %130 = vector.load %arg4[%c0_42, %129, %c0_43, %c0_44] : memref<1x8x2x16xbf16, #tpu.memory_space<vmem>>, vector<1x1x2x16xbf16>
    %131 = vector.shape_cast %130 : vector<1x1x2x16xbf16> to vector<2x16xbf16>
    %132 = vector.shape_cast %128 : vector<2x16xbf16> to vector<1x1x2x16xbf16>
    tpu.vector_store %arg4[%c0_42, %129, %c0_43, %c0_44], %132 {strides = array<i32>} : memref<1x8x2x16xbf16, #tpu.memory_space<vmem>>, vector<1x1x2x16xbf16>,
    %c3_i32 = arith.constant 3 : i32
    %c7_i32_45 = arith.constant 7 : i32
    %133 = arith.muli %arg0, %c7_i32_45 : i32
    %c2_i32_46 = arith.constant 2 : i32
    %134 = arith.muli %c2_i32_46, %arg0 : i32
    %c1_i32_47 = arith.constant 1 : i32
    %135 = arith.subi %c1_i32_47, %134 : i32
    %136 = arith.muli %135, %c3_i32 : i32
    %137 = arith.addi %133, %136 : i32
    %c0_48 = arith.constant 0 : index
    %138 = arith.index_cast %137 : i32 to index
    %c0_49 = arith.constant 0 : index
    %c0_50 = arith.constant 0 : index
    %139 = vector.load %arg2[%c0_48, %138, %c0_49, %c0_50] : memref<1x8x2x64xbf16, #tpu.memory_space<vmem>>, vector<1x1x2x64xbf16>
    %140 = vector.shape_cast %139 : vector<1x1x2x64xbf16> to vector<2x64xbf16>
    %141 = arith.extf %140 : vector<2x64xbf16> to vector<2x64xf32>
    %142 = arith.truncf %127 : vector<2x16xf32> to vector<2x16xbf16>
    %cst_51 = arith.constant dense<0.000000e+00> : vector<2x64xf32>
    %143 = tpu.matmul %142, %4, %cst_51 {dimension_numbers = #tpu.dot_dimension_numbers<[1], [0], [0], [1], [0, 0, 1, 1], [], []>} : vector<2x16xbf16>, vector<16x64xbf16>, vector<2x64xf32> -> vector<2x64xf32>
    %144 = arith.addf %141, %143 : vector<2x64xf32>
    %145 = vector.extract_strided_slice %144 {offsets = [0, 0], sizes = [2, 16], strides = [1, 1]} : vector<2x64xf32> to vector<2x16xf32>
    %146 = arith.negf %145 : vector<2x16xf32>
    %147 = math.exp %146 : vector<2x16xf32>
    %cst_52 = arith.constant 1.000000e+00 : f32
    %148 = vector.broadcast %cst_52 : f32 to vector<2x16xf32>
    %149 = arith.addf %148, %147 : vector<2x16xf32>
    %150 = arith.divf %148, %149 : vector<2x16xf32>
    %151 = vector.extract_strided_slice %144 {offsets = [0, 16], sizes = [2, 16], strides = [1, 1]} : vector<2x64xf32> to vector<2x16xf32>
    %152 = arith.negf %151 : vector<2x16xf32>
    %153 = math.exp %152 : vector<2x16xf32>
    %cst_53 = arith.constant 1.000000e+00 : f32
    %154 = vector.broadcast %cst_53 : f32 to vector<2x16xf32>
    %155 = arith.addf %154, %153 : vector<2x16xf32>
    %156 = arith.divf %154, %155 : vector<2x16xf32>
    %157 = vector.extract_strided_slice %144 {offsets = [0, 32], sizes = [2, 16], strides = [1, 1]} : vector<2x64xf32> to vector<2x16xf32>
    %158 = math.tanh %157 : vector<2x16xf32>
    %159 = vector.extract_strided_slice %144 {offsets = [0, 48], sizes = [2, 16], strides = [1, 1]} : vector<2x64xf32> to vector<2x16xf32>
    %160 = arith.negf %159 : vector<2x16xf32>
    %161 = math.exp %160 : vector<2x16xf32>
    %cst_54 = arith.constant 1.000000e+00 : f32
    %162 = vector.broadcast %cst_54 : f32 to vector<2x16xf32>
    %163 = arith.addf %162, %161 : vector<2x16xf32>
    %164 = arith.divf %162, %163 : vector<2x16xf32>
    %165 = arith.mulf %156, %125 : vector<2x16xf32>
    %166 = arith.mulf %150, %158 : vector<2x16xf32>
    %167 = arith.addf %165, %166 : vector<2x16xf32>
    %168 = math.tanh %167 : vector<2x16xf32>
    %169 = arith.mulf %164, %168 : vector<2x16xf32>
    %170 = arith.truncf %169 : vector<2x16xf32> to vector<2x16xbf16>
    %c0_55 = arith.constant 0 : index
    %171 = arith.index_cast %137 : i32 to index
    %c0_56 = arith.constant 0 : index
    %c0_57 = arith.constant 0 : index
    %172 = vector.load %arg4[%c0_55, %171, %c0_56, %c0_57] : memref<1x8x2x16xbf16, #tpu.memory_space<vmem>>, vector<1x1x2x16xbf16>
    %173 = vector.shape_cast %172 : vector<1x1x2x16xbf16> to vector<2x16xbf16>
    %174 = vector.shape_cast %170 : vector<2x16xbf16> to vector<1x1x2x16xbf16>
    tpu.vector_store %arg4[%c0_55, %171, %c0_56, %c0_57], %174 {strides = array<i32>} : memref<1x8x2x16xbf16, #tpu.memory_space<vmem>>, vector<1x1x2x16xbf16>,
    %c4_i32 = arith.constant 4 : i32
    %c7_i32_58 = arith.constant 7 : i32
    %175 = arith.muli %arg0, %c7_i32_58 : i32
    %c2_i32_59 = arith.constant 2 : i32
    %176 = arith.muli %c2_i32_59, %arg0 : i32
    %c1_i32_60 = arith.constant 1 : i32
    %177 = arith.subi %c1_i32_60, %176 : i32
    %178 = arith.muli %177, %c4_i32 : i32
    %179 = arith.addi %175, %178 : i32
    %c0_61 = arith.constant 0 : index
    %180 = arith.index_cast %179 : i32 to index
    %c0_62 = arith.constant 0 : index
    %c0_63 = arith.constant 0 : index
    %181 = vector.load %arg2[%c0_61, %180, %c0_62, %c0_63] : memref<1x8x2x64xbf16, #tpu.memory_space<vmem>>, vector<1x1x2x64xbf16>
    %182 = vector.shape_cast %181 : vector<1x1x2x64xbf16> to vector<2x64xbf16>
    %183 = arith.extf %182 : vector<2x64xbf16> to vector<2x64xf32>
    %184 = arith.truncf %169 : vector<2x16xf32> to vector<2x16xbf16>
    %cst_64 = arith.constant dense<0.000000e+00> : vector<2x64xf32>
    %185 = tpu.matmul %184, %4, %cst_64 {dimension_numbers = #tpu.dot_dimension_numbers<[1], [0], [0], [1], [0, 0, 1, 1], [], []>} : vector<2x16xbf16>, vector<16x64xbf16>, vector<2x64xf32> -> vector<2x64xf32>
    %186 = arith.addf %183, %185 : vector<2x64xf32>
    %187 = vector.extract_strided_slice %186 {offsets = [0, 0], sizes = [2, 16], strides = [1, 1]} : vector<2x64xf32> to vector<2x16xf32>
    %188 = arith.negf %187 : vector<2x16xf32>
    %189 = math.exp %188 : vector<2x16xf32>
    %cst_65 = arith.constant 1.000000e+00 : f32
    %190 = vector.broadcast %cst_65 : f32 to vector<2x16xf32>
    %191 = arith.addf %190, %189 : vector<2x16xf32>
    %192 = arith.divf %190, %191 : vector<2x16xf32>
    %193 = vector.extract_strided_slice %186 {offsets = [0, 16], sizes = [2, 16], strides = [1, 1]} : vector<2x64xf32> to vector<2x16xf32>
    %194 = arith.negf %193 : vector<2x16xf32>
    %195 = math.exp %194 : vector<2x16xf32>
    %cst_66 = arith.constant 1.000000e+00 : f32
    %196 = vector.broadcast %cst_66 : f32 to vector<2x16xf32>
    %197 = arith.addf %196, %195 : vector<2x16xf32>
    %198 = arith.divf %196, %197 : vector<2x16xf32>
    %199 = vector.extract_strided_slice %186 {offsets = [0, 32], sizes = [2, 16], strides = [1, 1]} : vector<2x64xf32> to vector<2x16xf32>
    %200 = math.tanh %199 : vector<2x16xf32>
    %201 = vector.extract_strided_slice %186 {offsets = [0, 48], sizes = [2, 16], strides = [1, 1]} : vector<2x64xf32> to vector<2x16xf32>
    %202 = arith.negf %201 : vector<2x16xf32>
    %203 = math.exp %202 : vector<2x16xf32>
    %cst_67 = arith.constant 1.000000e+00 : f32
    %204 = vector.broadcast %cst_67 : f32 to vector<2x16xf32>
    %205 = arith.addf %204, %203 : vector<2x16xf32>
    %206 = arith.divf %204, %205 : vector<2x16xf32>
    %207 = arith.mulf %198, %167 : vector<2x16xf32>
    %208 = arith.mulf %192, %200 : vector<2x16xf32>
    %209 = arith.addf %207, %208 : vector<2x16xf32>
    %210 = math.tanh %209 : vector<2x16xf32>
    %211 = arith.mulf %206, %210 : vector<2x16xf32>
    %212 = arith.truncf %211 : vector<2x16xf32> to vector<2x16xbf16>
    %c0_68 = arith.constant 0 : index
    %213 = arith.index_cast %179 : i32 to index
    %c0_69 = arith.constant 0 : index
    %c0_70 = arith.constant 0 : index
    %214 = vector.load %arg4[%c0_68, %213, %c0_69, %c0_70] : memref<1x8x2x16xbf16, #tpu.memory_space<vmem>>, vector<1x1x2x16xbf16>
    %215 = vector.shape_cast %214 : vector<1x1x2x16xbf16> to vector<2x16xbf16>
    %216 = vector.shape_cast %212 : vector<2x16xbf16> to vector<1x1x2x16xbf16>
    tpu.vector_store %arg4[%c0_68, %213, %c0_69, %c0_70], %216 {strides = array<i32>} : memref<1x8x2x16xbf16, #tpu.memory_space<vmem>>, vector<1x1x2x16xbf16>,
    %c5_i32 = arith.constant 5 : i32
    %c7_i32_71 = arith.constant 7 : i32
    %217 = arith.muli %arg0, %c7_i32_71 : i32
    %c2_i32_72 = arith.constant 2 : i32
    %218 = arith.muli %c2_i32_72, %arg0 : i32
    %c1_i32_73 = arith.constant 1 : i32
    %219 = arith.subi %c1_i32_73, %218 : i32
    %220 = arith.muli %219, %c5_i32 : i32
    %221 = arith.addi %217, %220 : i32
    %c0_74 = arith.constant 0 : index
    %222 = arith.index_cast %221 : i32 to index
    %c0_75 = arith.constant 0 : index
    %c0_76 = arith.constant 0 : index
    %223 = vector.load %arg2[%c0_74, %222, %c0_75, %c0_76] : memref<1x8x2x64xbf16, #tpu.memory_space<vmem>>, vector<1x1x2x64xbf16>
    %224 = vector.shape_cast %223 : vector<1x1x2x64xbf16> to vector<2x64xbf16>
    %225 = arith.extf %224 : vector<2x64xbf16> to vector<2x64xf32>
    %226 = arith.truncf %211 : vector<2x16xf32> to vector<2x16xbf16>
    %cst_77 = arith.constant dense<0.000000e+00> : vector<2x64xf32>
    %227 = tpu.matmul %226, %4, %cst_77 {dimension_numbers = #tpu.dot_dimension_numbers<[1], [0], [0], [1], [0, 0, 1, 1], [], []>} : vector<2x16xbf16>, vector<16x64xbf16>, vector<2x64xf32> -> vector<2x64xf32>
    %228 = arith.addf %225, %227 : vector<2x64xf32>
    %229 = vector.extract_strided_slice %228 {offsets = [0, 0], sizes = [2, 16], strides = [1, 1]} : vector<2x64xf32> to vector<2x16xf32>
    %230 = arith.negf %229 : vector<2x16xf32>
    %231 = math.exp %230 : vector<2x16xf32>
    %cst_78 = arith.constant 1.000000e+00 : f32
    %232 = vector.broadcast %cst_78 : f32 to vector<2x16xf32>
    %233 = arith.addf %232, %231 : vector<2x16xf32>
    %234 = arith.divf %232, %233 : vector<2x16xf32>
    %235 = vector.extract_strided_slice %228 {offsets = [0, 16], sizes = [2, 16], strides = [1, 1]} : vector<2x64xf32> to vector<2x16xf32>
    %236 = arith.negf %235 : vector<2x16xf32>
    %237 = math.exp %236 : vector<2x16xf32>
    %cst_79 = arith.constant 1.000000e+00 : f32
    %238 = vector.broadcast %cst_79 : f32 to vector<2x16xf32>
    %239 = arith.addf %238, %237 : vector<2x16xf32>
    %240 = arith.divf %238, %239 : vector<2x16xf32>
    %241 = vector.extract_strided_slice %228 {offsets = [0, 32], sizes = [2, 16], strides = [1, 1]} : vector<2x64xf32> to vector<2x16xf32>
    %242 = math.tanh %241 : vector<2x16xf32>
    %243 = vector.extract_strided_slice %228 {offsets = [0, 48], sizes = [2, 16], strides = [1, 1]} : vector<2x64xf32> to vector<2x16xf32>
    %244 = arith.negf %243 : vector<2x16xf32>
    %245 = math.exp %244 : vector<2x16xf32>
    %cst_80 = arith.constant 1.000000e+00 : f32
    %246 = vector.broadcast %cst_80 : f32 to vector<2x16xf32>
    %247 = arith.addf %246, %245 : vector<2x16xf32>
    %248 = arith.divf %246, %247 : vector<2x16xf32>
    %249 = arith.mulf %240, %209 : vector<2x16xf32>
    %250 = arith.mulf %234, %242 : vector<2x16xf32>
    %251 = arith.addf %249, %250 : vector<2x16xf32>
    %252 = math.tanh %251 : vector<2x16xf32>
    %253 = arith.mulf %248, %252 : vector<2x16xf32>
    %254 = arith.truncf %253 : vector<2x16xf32> to vector<2x16xbf16>
    %c0_81 = arith.constant 0 : index
    %255 = arith.index_cast %221 : i32 to index
    %c0_82 = arith.constant 0 : index
    %c0_83 = arith.constant 0 : index
    %256 = vector.load %arg4[%c0_81, %255, %c0_82, %c0_83] : memref<1x8x2x16xbf16, #tpu.memory_space<vmem>>, vector<1x1x2x16xbf16>
    %257 = vector.shape_cast %256 : vector<1x1x2x16xbf16> to vector<2x16xbf16>
    %258 = vector.shape_cast %254 : vector<2x16xbf16> to vector<1x1x2x16xbf16>
    tpu.vector_store %arg4[%c0_81, %255, %c0_82, %c0_83], %258 {strides = array<i32>} : memref<1x8x2x16xbf16, #tpu.memory_space<vmem>>, vector<1x1x2x16xbf16>,
    %c6_i32 = arith.constant 6 : i32
    %c7_i32_84 = arith.constant 7 : i32
    %259 = arith.muli %arg0, %c7_i32_84 : i32
    %c2_i32_85 = arith.constant 2 : i32
    %260 = arith.muli %c2_i32_85, %arg0 : i32
    %c1_i32_86 = arith.constant 1 : i32
    %261 = arith.subi %c1_i32_86, %260 : i32
    %262 = arith.muli %261, %c6_i32 : i32
    %263 = arith.addi %259, %262 : i32
    %c0_87 = arith.constant 0 : index
    %264 = arith.index_cast %263 : i32 to index
    %c0_88 = arith.constant 0 : index
    %c0_89 = arith.constant 0 : index
    %265 = vector.load %arg2[%c0_87, %264, %c0_88, %c0_89] : memref<1x8x2x64xbf16, #tpu.memory_space<vmem>>, vector<1x1x2x64xbf16>
    %266 = vector.shape_cast %265 : vector<1x1x2x64xbf16> to vector<2x64xbf16>
    %267 = arith.extf %266 : vector<2x64xbf16> to vector<2x64xf32>
    %268 = arith.truncf %253 : vector<2x16xf32> to vector<2x16xbf16>
    %cst_90 = arith.constant dense<0.000000e+00> : vector<2x64xf32>
    %269 = tpu.matmul %268, %4, %cst_90 {dimension_numbers = #tpu.dot_dimension_numbers<[1], [0], [0], [1], [0, 0, 1, 1], [], []>} : vector<2x16xbf16>, vector<16x64xbf16>, vector<2x64xf32> -> vector<2x64xf32>
    %270 = arith.addf %267, %269 : vector<2x64xf32>
    %271 = vector.extract_strided_slice %270 {offsets = [0, 0], sizes = [2, 16], strides = [1, 1]} : vector<2x64xf32> to vector<2x16xf32>
    %272 = arith.negf %271 : vector<2x16xf32>
    %273 = math.exp %272 : vector<2x16xf32>
    %cst_91 = arith.constant 1.000000e+00 : f32
    %274 = vector.broadcast %cst_91 : f32 to vector<2x16xf32>
    %275 = arith.addf %274, %273 : vector<2x16xf32>
    %276 = arith.divf %274, %275 : vector<2x16xf32>
    %277 = vector.extract_strided_slice %270 {offsets = [0, 16], sizes = [2, 16], strides = [1, 1]} : vector<2x64xf32> to vector<2x16xf32>
    %278 = arith.negf %277 : vector<2x16xf32>
    %279 = math.exp %278 : vector<2x16xf32>
    %cst_92 = arith.constant 1.000000e+00 : f32
    %280 = vector.broadcast %cst_92 : f32 to vector<2x16xf32>
    %281 = arith.addf %280, %279 : vector<2x16xf32>
    %282 = arith.divf %280, %281 : vector<2x16xf32>
    %283 = vector.extract_strided_slice %270 {offsets = [0, 32], sizes = [2, 16], strides = [1, 1]} : vector<2x64xf32> to vector<2x16xf32>
    %284 = math.tanh %283 : vector<2x16xf32>
    %285 = vector.extract_strided_slice %270 {offsets = [0, 48], sizes = [2, 16], strides = [1, 1]} : vector<2x64xf32> to vector<2x16xf32>
    %286 = arith.negf %285 : vector<2x16xf32>
    %287 = math.exp %286 : vector<2x16xf32>
    %cst_93 = arith.constant 1.000000e+00 : f32
    %288 = vector.broadcast %cst_93 : f32 to vector<2x16xf32>
    %289 = arith.addf %288, %287 : vector<2x16xf32>
    %290 = arith.divf %288, %289 : vector<2x16xf32>
    %291 = arith.mulf %282, %251 : vector<2x16xf32>
    %292 = arith.mulf %276, %284 : vector<2x16xf32>
    %293 = arith.addf %291, %292 : vector<2x16xf32>
    %294 = math.tanh %293 : vector<2x16xf32>
    %295 = arith.mulf %290, %294 : vector<2x16xf32>
    %296 = arith.truncf %295 : vector<2x16xf32> to vector<2x16xbf16>
    %c0_94 = arith.constant 0 : index
    %297 = arith.index_cast %263 : i32 to index
    %c0_95 = arith.constant 0 : index
    %c0_96 = arith.constant 0 : index
    %298 = vector.load %arg4[%c0_94, %297, %c0_95, %c0_96] : memref<1x8x2x16xbf16, #tpu.memory_space<vmem>>, vector<1x1x2x16xbf16>
    %299 = vector.shape_cast %298 : vector<1x1x2x16xbf16> to vector<2x16xbf16>
    %300 = vector.shape_cast %296 : vector<2x16xbf16> to vector<1x1x2x16xbf16>
    tpu.vector_store %arg4[%c0_94, %297, %c0_95, %c0_96], %300 {strides = array<i32>} : memref<1x8x2x16xbf16, #tpu.memory_space<vmem>>, vector<1x1x2x16xbf16>,
    %c7_i32_97 = arith.constant 7 : i32
    %c7_i32_98 = arith.constant 7 : i32
    %301 = arith.muli %arg0, %c7_i32_98 : i32
    %c2_i32_99 = arith.constant 2 : i32
    %302 = arith.muli %c2_i32_99, %arg0 : i32
    %c1_i32_100 = arith.constant 1 : i32
    %303 = arith.subi %c1_i32_100, %302 : i32
    %304 = arith.muli %303, %c7_i32_97 : i32
    %305 = arith.addi %301, %304 : i32
    %c0_101 = arith.constant 0 : index
    %306 = arith.index_cast %305 : i32 to index
    %c0_102 = arith.constant 0 : index
    %c0_103 = arith.constant 0 : index
    %307 = vector.load %arg2[%c0_101, %306, %c0_102, %c0_103] : memref<1x8x2x64xbf16, #tpu.memory_space<vmem>>, vector<1x1x2x64xbf16>
    %308 = vector.shape_cast %307 : vector<1x1x2x64xbf16> to vector<2x64xbf16>
    %309 = arith.extf %308 : vector<2x64xbf16> to vector<2x64xf32>
    %310 = arith.truncf %295 : vector<2x16xf32> to vector<2x16xbf16>
    %cst_104 = arith.constant dense<0.000000e+00> : vector<2x64xf32>
    %311 = tpu.matmul %310, %4, %cst_104 {dimension_numbers = #tpu.dot_dimension_numbers<[1], [0], [0], [1], [0, 0, 1, 1], [], []>} : vector<2x16xbf16>, vector<16x64xbf16>, vector<2x64xf32> -> vector<2x64xf32>
    %312 = arith.addf %309, %311 : vector<2x64xf32>
    %313 = vector.extract_strided_slice %312 {offsets = [0, 0], sizes = [2, 16], strides = [1, 1]} : vector<2x64xf32> to vector<2x16xf32>
    %314 = arith.negf %313 : vector<2x16xf32>
    %315 = math.exp %314 : vector<2x16xf32>
    %cst_105 = arith.constant 1.000000e+00 : f32
    %316 = vector.broadcast %cst_105 : f32 to vector<2x16xf32>
    %317 = arith.addf %316, %315 : vector<2x16xf32>
    %318 = arith.divf %316, %317 : vector<2x16xf32>
    %319 = vector.extract_strided_slice %312 {offsets = [0, 16], sizes = [2, 16], strides = [1, 1]} : vector<2x64xf32> to vector<2x16xf32>
    %320 = arith.negf %319 : vector<2x16xf32>
    %321 = math.exp %320 : vector<2x16xf32>
    %cst_106 = arith.constant 1.000000e+00 : f32
    %322 = vector.broadcast %cst_106 : f32 to vector<2x16xf32>
    %323 = arith.addf %322, %321 : vector<2x16xf32>
    %324 = arith.divf %322, %323 : vector<2x16xf32>
    %325 = vector.extract_strided_slice %312 {offsets = [0, 32], sizes = [2, 16], strides = [1, 1]} : vector<2x64xf32> to vector<2x16xf32>
    %326 = math.tanh %325 : vector<2x16xf32>
    %327 = vector.extract_strided_slice %312 {offsets = [0, 48], sizes = [2, 16], strides = [1, 1]} : vector<2x64xf32> to vector<2x16xf32>
    %328 = arith.negf %327 : vector<2x16xf32>
    %329 = math.exp %328 : vector<2x16xf32>
    %cst_107 = arith.constant 1.000000e+00 : f32
    %330 = vector.broadcast %cst_107 : f32 to vector<2x16xf32>
    %331 = arith.addf %330, %329 : vector<2x16xf32>
    %332 = arith.divf %330, %331 : vector<2x16xf32>
    %333 = arith.mulf %324, %293 : vector<2x16xf32>
    %334 = arith.mulf %318, %326 : vector<2x16xf32>
    %335 = arith.addf %333, %334 : vector<2x16xf32>
    %336 = math.tanh %335 : vector<2x16xf32>
    %337 = arith.mulf %332, %336 : vector<2x16xf32>
    %338 = arith.truncf %337 : vector<2x16xf32> to vector<2x16xbf16>
    %c0_108 = arith.constant 0 : index
    %339 = arith.index_cast %305 : i32 to index
    %c0_109 = arith.constant 0 : index
    %c0_110 = arith.constant 0 : index
    %340 = vector.load %arg4[%c0_108, %339, %c0_109, %c0_110] : memref<1x8x2x16xbf16, #tpu.memory_space<vmem>>, vector<1x1x2x16xbf16>
    %341 = vector.shape_cast %340 : vector<1x1x2x16xbf16> to vector<2x16xbf16>
    %342 = vector.shape_cast %338 : vector<2x16xbf16> to vector<1x1x2x16xbf16>
    tpu.vector_store %arg4[%c0_108, %339, %c0_109, %c0_110], %342 {strides = array<i32>} : memref<1x8x2x16xbf16, #tpu.memory_space<vmem>>, vector<1x1x2x16xbf16>,
    %c8_i32 = arith.constant 8 : i32
    %c0_111 = arith.constant 0 : index
    %c0_112 = arith.constant 0 : index
    %343 = vector.load %arg5[%c0_111, %c0_112] : memref<2x16xf32, #tpu.memory_space<vmem>>, vector<2x16xf32>
    tpu.vector_store %arg5[%c0_111, %c0_112], %337 {strides = array<i32>} : memref<2x16xf32, #tpu.memory_space<vmem>>, vector<2x16xf32>,
    %c0_113 = arith.constant 0 : index
    %c0_114 = arith.constant 0 : index
    %344 = vector.load %arg6[%c0_113, %c0_114] : memref<2x16xf32, #tpu.memory_space<vmem>>, vector<2x16xf32>
    tpu.vector_store %arg6[%c0_113, %c0_114], %335 {strides = array<i32>} : memref<2x16xf32, #tpu.memory_space<vmem>>, vector<2x16xf32>,
    return
  }
  func.func @transform_0(%arg0: i32, %arg1: i32) -> (i32, i32, i32, i32) {
    %c0_i32 = arith.constant 0 : i32
    %0 = arith.muli %arg0, %c0_i32 : i32
    %c2_i32 = arith.constant 2 : i32
    %1 = arith.muli %c2_i32, %arg0 : i32
    %c1_i32 = arith.constant 1 : i32
    %2 = arith.subi %c1_i32, %1 : i32
    %3 = arith.muli %2, %arg1 : i32
    %4 = arith.addi %0, %3 : i32
    %c0_i32_0 = arith.constant 0 : i32
    %c0_i32_1 = arith.constant 0 : i32
    %c0_i32_2 = arith.constant 0 : i32
    return %arg0, %4, %c0_i32_0, %c0_i32_1 : i32, i32, i32, i32
  }
  func.func @transform_1(%arg0: i32, %arg1: i32) -> (i32, i32, i32) {
    %c0_i32 = arith.constant 0 : i32
    %c0_i32_0 = arith.constant 0 : i32
    %c0_i32_1 = arith.constant 0 : i32
    return %arg0, %c0_i32, %c0_i32_0 : i32, i32, i32
  }
  func.func @transform_2(%arg0: i32, %arg1: i32) -> (i32, i32, i32, i32) {
    %c0_i32 = arith.constant 0 : i32
    %0 = arith.muli %arg0, %c0_i32 : i32
    %c2_i32 = arith.constant 2 : i32
    %1 = arith.muli %c2_i32, %arg0 : i32
    %c1_i32 = arith.constant 1 : i32
    %2 = arith.subi %c1_i32, %1 : i32
    %3 = arith.muli %2, %arg1 : i32
    %4 = arith.addi %0, %3 : i32
    %c0_i32_0 = arith.constant 0 : i32
    %c0_i32_1 = arith.constant 0 : i32
    %c0_i32_2 = arith.constant 0 : i32
    return %arg0, %4, %c0_i32_0, %c0_i32_1 : i32, i32, i32, i32
  }
}

module attributes {stable_mosaic.version = 11 : i64} {
  func.func @_block2_kernel(%arg0: i32, %arg1: memref<16x32xf32, #tpu.memory_space<vmem>>, %arg2: memref<2x16x16xbf16, #tpu.memory_space<vmem>>, %arg3: memref<32x32xbf16, #tpu.memory_space<vmem>>, %arg4: memref<16x32xbf16, #tpu.memory_space<vmem>>, %arg5: memref<16x32xbf16, #tpu.memory_space<vmem>>, %arg6: memref<1x32xf32, #tpu.memory_space<vmem>>, %arg7: memref<1x32xf32, #tpu.memory_space<vmem>>, %arg8: memref<16x32xbf16, #tpu.memory_space<vmem>>) attributes {dimension_semantics = [#tpu.dimension_semantics<parallel>], iteration_bounds = array<i64: 1>, scalar_prefetch = 0 : i64, scratch_operands = 0 : i64, tpu.core_type = #tpu.core_type<tc>, window_params = [{transform_indices = @transform_0, window_bounds = array<i64: 16, 32>}, {transform_indices = @transform_1, window_bounds = array<i64: 2, 16, 16>}, {pipeline_mode = #tpu.pipeline_mode<synchronous>, transform_indices = @transform_2, window_bounds = array<i64: 32, 32>}, {pipeline_mode = #tpu.pipeline_mode<synchronous>, transform_indices = @transform_3, window_bounds = array<i64: 16, 32>}, {pipeline_mode = #tpu.pipeline_mode<synchronous>, transform_indices = @transform_4, window_bounds = array<i64: 16, 32>}, {pipeline_mode = #tpu.pipeline_mode<synchronous>, transform_indices = @transform_5, window_bounds = array<i64: 1, 32>}, {pipeline_mode = #tpu.pipeline_mode<synchronous>, transform_indices = @transform_6, window_bounds = array<i64: 1, 32>}, {transform_indices = @transform_7, window_bounds = array<i64: 16, 32>}]} {
    %c0 = arith.constant 0 : index
    %c0_0 = arith.constant 0 : index
    %0 = vector.load %arg1[%c0, %c0_0] : memref<16x32xf32, #tpu.memory_space<vmem>>, vector<16x32xf32>
    %1 = arith.truncf %0 : vector<16x32xf32> to vector<16x32xbf16>
    %c0_1 = arith.constant 0 : index
    %c0_2 = arith.constant 0 : index
    %2 = vector.load %arg3[%c0_1, %c0_2] : memref<32x32xbf16, #tpu.memory_space<vmem>>, vector<32x32xbf16>
    %cst = arith.constant dense<0.000000e+00> : vector<16x32xf32>
    %3 = tpu.matmul %1, %2, %cst {dimension_numbers = #tpu.dot_dimension_numbers<[1], [0], [0], [1], [0, 0, 1, 1], [], []>} : vector<16x32xbf16>, vector<32x32xbf16>, vector<16x32xf32> -> vector<16x32xf32>
    %c0_3 = arith.constant 0 : index
    %c0_4 = arith.constant 0 : index
    %c0_5 = arith.constant 0 : index
    %4 = vector.load %arg2[%c0_3, %c0_4, %c0_5] : memref<2x16x16xbf16, #tpu.memory_space<vmem>>, vector<1x16x16xbf16>
    %5 = vector.shape_cast %4 : vector<1x16x16xbf16> to vector<16x16xbf16>
    %c0_6 = arith.constant 0 : index
    %c0_7 = arith.constant 0 : index
    %6 = vector.load %arg4[%c0_6, %c0_7] : memref<16x32xbf16, #tpu.memory_space<vmem>>, vector<16x32xbf16>
    %cst_8 = arith.constant dense<0.000000e+00> : vector<16x32xf32>
    %7 = tpu.matmul %5, %6, %cst_8 {dimension_numbers = #tpu.dot_dimension_numbers<[1], [0], [0], [1], [0, 0, 1, 1], [], []>} : vector<16x16xbf16>, vector<16x32xbf16>, vector<16x32xf32> -> vector<16x32xf32>
    %8 = arith.addf %3, %7 : vector<16x32xf32>
    %c1 = arith.constant 1 : index
    %c0_9 = arith.constant 0 : index
    %c0_10 = arith.constant 0 : index
    %9 = vector.load %arg2[%c1, %c0_9, %c0_10] : memref<2x16x16xbf16, #tpu.memory_space<vmem>>, vector<1x16x16xbf16>
    %10 = vector.shape_cast %9 : vector<1x16x16xbf16> to vector<16x16xbf16>
    %c0_11 = arith.constant 0 : index
    %c0_12 = arith.constant 0 : index
    %11 = vector.load %arg5[%c0_11, %c0_12] : memref<16x32xbf16, #tpu.memory_space<vmem>>, vector<16x32xbf16>
    %cst_13 = arith.constant dense<0.000000e+00> : vector<16x32xf32>
    %12 = tpu.matmul %10, %11, %cst_13 {dimension_numbers = #tpu.dot_dimension_numbers<[1], [0], [0], [1], [0, 0, 1, 1], [], []>} : vector<16x16xbf16>, vector<16x32xbf16>, vector<16x32xf32> -> vector<16x32xf32>
    %13 = arith.addf %8, %12 : vector<16x32xf32>
    %c0_14 = arith.constant 0 : index
    %c0_15 = arith.constant 0 : index
    %14 = vector.load %arg6[%c0_14, %c0_15] : memref<1x32xf32, #tpu.memory_space<vmem>>, vector<1x32xf32>
    %15 = vector.broadcast %14 : vector<1x32xf32> to vector<16x32xf32>
    %16 = arith.mulf %13, %15 : vector<16x32xf32>
    %c0_16 = arith.constant 0 : index
    %c0_17 = arith.constant 0 : index
    %17 = vector.load %arg7[%c0_16, %c0_17] : memref<1x32xf32, #tpu.memory_space<vmem>>, vector<1x32xf32>
    %18 = vector.broadcast %17 : vector<1x32xf32> to vector<16x32xf32>
    %19 = arith.addf %16, %18 : vector<16x32xf32>
    %cst_18 = arith.constant 0.000000e+00 : f32
    %20 = vector.broadcast %cst_18 : f32 to vector<16x32xf32>
    %21 = arith.maximumf %19, %20 : vector<16x32xf32>
    %22 = arith.truncf %21 : vector<16x32xf32> to vector<16x32xbf16>
    %c0_19 = arith.constant 0 : index
    %c0_20 = arith.constant 0 : index
    %23 = vector.load %arg8[%c0_19, %c0_20] : memref<16x32xbf16, #tpu.memory_space<vmem>>, vector<16x32xbf16>
    tpu.vector_store %arg8[%c0_19, %c0_20], %22 {strides = array<i32>} : memref<16x32xbf16, #tpu.memory_space<vmem>>, vector<16x32xbf16>,
    return
  }
  func.func @transform_0(%arg0: i32) -> (i32, i32) {
    %c0_i32 = arith.constant 0 : i32
    %c0_i32_0 = arith.constant 0 : i32
    return %arg0, %c0_i32 : i32, i32
  }
  func.func @transform_1(%arg0: i32) -> (i32, i32, i32) {
    %c0_i32 = arith.constant 0 : i32
    %c0_i32_0 = arith.constant 0 : i32
    %c0_i32_1 = arith.constant 0 : i32
    return %c0_i32, %arg0, %c0_i32_0 : i32, i32, i32
  }
  func.func @transform_2(%arg0: i32) -> (i32, i32) {
    %c0_i32 = arith.constant 0 : i32
    %c0_i32_0 = arith.constant 0 : i32
    %c0_i32_1 = arith.constant 0 : i32
    return %c0_i32, %c0_i32_0 : i32, i32
  }
  func.func @transform_3(%arg0: i32) -> (i32, i32) {
    %c0_i32 = arith.constant 0 : i32
    %c0_i32_0 = arith.constant 0 : i32
    %c0_i32_1 = arith.constant 0 : i32
    return %c0_i32, %c0_i32_0 : i32, i32
  }
  func.func @transform_4(%arg0: i32) -> (i32, i32) {
    %c0_i32 = arith.constant 0 : i32
    %c0_i32_0 = arith.constant 0 : i32
    %c0_i32_1 = arith.constant 0 : i32
    return %c0_i32, %c0_i32_0 : i32, i32
  }
  func.func @transform_5(%arg0: i32) -> (i32, i32) {
    %c0_i32 = arith.constant 0 : i32
    %c0_i32_0 = arith.constant 0 : i32
    %c0_i32_1 = arith.constant 0 : i32
    return %c0_i32, %c0_i32_0 : i32, i32
  }
  func.func @transform_6(%arg0: i32) -> (i32, i32) {
    %c0_i32 = arith.constant 0 : i32
    %c0_i32_0 = arith.constant 0 : i32
    %c0_i32_1 = arith.constant 0 : i32
    return %c0_i32, %c0_i32_0 : i32, i32
  }
  func.func @transform_7(%arg0: i32) -> (i32, i32) {
    %c0_i32 = arith.constant 0 : i32
    %c0_i32_0 = arith.constant 0 : i32
    return %arg0, %c0_i32 : i32, i32
  }
}

module attributes {stable_mosaic.version = 11 : i64} {
  func.func @_block3_kernel(%arg0: i32, %arg1: memref<16x32xbf16, #tpu.memory_space<vmem>>, %arg2: memref<16x32xbf16, #tpu.memory_space<vmem>>, %arg3: memref<32x32xbf16, #tpu.memory_space<vmem>>, %arg4: memref<1x32xf32, #tpu.memory_space<vmem>>, %arg5: memref<1x32xf32, #tpu.memory_space<vmem>>, %arg6: memref<16x32xf32, #tpu.memory_space<vmem>>) attributes {dimension_semantics = [#tpu.dimension_semantics<parallel>], iteration_bounds = array<i64: 1>, scalar_prefetch = 0 : i64, scratch_operands = 0 : i64, tpu.core_type = #tpu.core_type<tc>, window_params = [{transform_indices = @transform_0, window_bounds = array<i64: 16, 32>}, {transform_indices = @transform_1, window_bounds = array<i64: 16, 32>}, {pipeline_mode = #tpu.pipeline_mode<synchronous>, transform_indices = @transform_2, window_bounds = array<i64: 32, 32>}, {pipeline_mode = #tpu.pipeline_mode<synchronous>, transform_indices = @transform_3, window_bounds = array<i64: 1, 32>}, {pipeline_mode = #tpu.pipeline_mode<synchronous>, transform_indices = @transform_4, window_bounds = array<i64: 1, 32>}, {transform_indices = @transform_5, window_bounds = array<i64: 16, 32>}]} {
    %c0 = arith.constant 0 : index
    %c0_0 = arith.constant 0 : index
    %0 = vector.load %arg1[%c0, %c0_0] : memref<16x32xbf16, #tpu.memory_space<vmem>>, vector<16x32xbf16>
    %c0_1 = arith.constant 0 : index
    %c0_2 = arith.constant 0 : index
    %1 = vector.load %arg3[%c0_1, %c0_2] : memref<32x32xbf16, #tpu.memory_space<vmem>>, vector<32x32xbf16>
    %cst = arith.constant dense<0.000000e+00> : vector<16x32xf32>
    %2 = tpu.matmul %0, %1, %cst {dimension_numbers = #tpu.dot_dimension_numbers<[1], [0], [0], [1], [0, 0, 1, 1], [], []>} : vector<16x32xbf16>, vector<32x32xbf16>, vector<16x32xf32> -> vector<16x32xf32>
    %c0_3 = arith.constant 0 : index
    %c0_4 = arith.constant 0 : index
    %3 = vector.load %arg4[%c0_3, %c0_4] : memref<1x32xf32, #tpu.memory_space<vmem>>, vector<1x32xf32>
    %4 = vector.broadcast %3 : vector<1x32xf32> to vector<16x32xf32>
    %5 = arith.mulf %2, %4 : vector<16x32xf32>
    %c0_5 = arith.constant 0 : index
    %c0_6 = arith.constant 0 : index
    %6 = vector.load %arg5[%c0_5, %c0_6] : memref<1x32xf32, #tpu.memory_space<vmem>>, vector<1x32xf32>
    %7 = vector.broadcast %6 : vector<1x32xf32> to vector<16x32xf32>
    %8 = arith.addf %5, %7 : vector<16x32xf32>
    %cst_7 = arith.constant 0.000000e+00 : f32
    %9 = vector.broadcast %cst_7 : f32 to vector<16x32xf32>
    %10 = arith.maximumf %8, %9 : vector<16x32xf32>
    %c0_8 = arith.constant 0 : index
    %c0_9 = arith.constant 0 : index
    %11 = vector.load %arg2[%c0_8, %c0_9] : memref<16x32xbf16, #tpu.memory_space<vmem>>, vector<16x32xbf16>
    %12 = arith.extf %11 : vector<16x32xbf16> to vector<16x32xf32>
    %13 = arith.mulf %10, %12 : vector<16x32xf32>
    %c0_10 = arith.constant 0 : index
    %c0_11 = arith.constant 0 : index
    %14 = vector.load %arg6[%c0_10, %c0_11] : memref<16x32xf32, #tpu.memory_space<vmem>>, vector<16x32xf32>
    tpu.vector_store %arg6[%c0_10, %c0_11], %13 {strides = array<i32>} : memref<16x32xf32, #tpu.memory_space<vmem>>, vector<16x32xf32>,
    return
  }
  func.func @transform_0(%arg0: i32) -> (i32, i32) {
    %c0_i32 = arith.constant 0 : i32
    %c0_i32_0 = arith.constant 0 : i32
    return %arg0, %c0_i32 : i32, i32
  }
  func.func @transform_1(%arg0: i32) -> (i32, i32) {
    %c0_i32 = arith.constant 0 : i32
    %c0_i32_0 = arith.constant 0 : i32
    return %arg0, %c0_i32 : i32, i32
  }
  func.func @transform_2(%arg0: i32) -> (i32, i32) {
    %c0_i32 = arith.constant 0 : i32
    %c0_i32_0 = arith.constant 0 : i32
    %c0_i32_1 = arith.constant 0 : i32
    return %c0_i32, %c0_i32_0 : i32, i32
  }
  func.func @transform_3(%arg0: i32) -> (i32, i32) {
    %c0_i32 = arith.constant 0 : i32
    %c0_i32_0 = arith.constant 0 : i32
    %c0_i32_1 = arith.constant 0 : i32
    return %c0_i32, %c0_i32_0 : i32, i32
  }
  func.func @transform_4(%arg0: i32) -> (i32, i32) {
    %c0_i32 = arith.constant 0 : i32
    %c0_i32_0 = arith.constant 0 : i32
    %c0_i32_1 = arith.constant 0 : i32
    return %c0_i32, %c0_i32_0 : i32, i32
  }
  func.func @transform_5(%arg0: i32) -> (i32, i32) {
    %c0_i32 = arith.constant 0 : i32
    %c0_i32_0 = arith.constant 0 : i32
    return %arg0, %c0_i32 : i32, i32
  }
}

</mosaic_0001>

<llo_original>
// kernel: tile.29
$region0: #{tile.29}
  %s0 = inlined_call_operand.vmem [shape: f32[2,8], index: 0, kind: input, shape index: {}]
  %s1 = inlined_call_operand.vmem [shape: f32[1,16], index: 1, kind: output, shape index: {}]
  $region1: #{tile.29} parent=0
    #allocation0 [shape = 'u8[4096]{0}', space=vmem, size = 0x1000, scoped, tag = 'scoped mem for output reshape']
    #allocation1 [shape = 'u8[4096]{0}', space=vmem, size = 0x1000, scoped, tag = 'scoped mem for input reshape']
    %s3 = ssub.s32 4, 1
    %v4 = vld [vmem:[%s0] sm:%s3]
    %5 = vst [vmem:[#allocation1] sm:%s3] %v4
    %v6 = vld [vmem:[#allocation1] sm:$0x1]
    %vm7 = vcmask 64512
    %8 = vst.msk [vmem:[#allocation0] sm:$0x1] %vm7, %v6
    %s9 = scalar_lea.vmem [#allocation1], 1
    %v10 = vld [vmem:[%s9] sm:$0x1]
    %11 = vrot.lane.b32.xlu0 %v10, 8
    %v12 = vpop.permute.xlu0 %11
    %vm13 = vcmask 130112
    %14 = vst.msk [vmem:[#allocation0] sm:$0x1] %vm13, %v12
    %s16 = ssub.s32 2, 1
    %v17 = vld [vmem:[#allocation0] sm:%s16]
    %s19 = ssub.s32 2, 1
    %20 = vst [vmem:[%s1] sm:%s19] %v17

// kernel: tile.28
$region0: #{tile.28}
  #allocation0 [shape = 's32[1]{0}', space=sflag, size = 0x4, scoped, tag = 'scoped memory for tile.28']
  %s0 = inlined_call_operand.vmem [shape: f32[8], index: 0, kind: input, shape index: {}]
  %s1 = inlined_call_operand.vmem [shape: f32[2,8], index: 1, kind: output, shape index: {}]
  // Predicated region
  $region2: #{tile.28} parent=0 // pred_check
    _
  $region3: #{tile.28} parent=0 // pred_check_branch
    %3 = sbr.rel (0) target = $region5
  $region4: #{tile.28} parent=0 // pred_region
    _
  $region5: #{tile.28} parent=0 // pred_fallthru
    _
  %v4 = vld [vmem:[%s0] ss:$0 sm:$0xff]
  %5 = vst [vmem:[%s1] sm:$0x3] %v4

// kernel: openunmix_forward.8
$region0: #{openunmix_forward.8}
  #allocation0 [shape = 'u32[]', space=smem, size = 0x4, offset = 0x4, fixed_abs, tag = 'smem constant byte address 0x4 - core index']
  #allocation1 [shape = 'u32[72,128]{1,0:T(1,128)}', space=vmem, size = 0x9000, scoped, tag = 'internal scratch']
  %s0 = inlined_call_operand.vmem [shape: f32[16,32], index: 0, kind: input, shape index: {}]
  %s1 = inlined_call_operand.vmem [shape: bf16[32,64], index: 1, kind: input, shape index: {}]
  %s2 = inlined_call_operand.vmem [shape: bf16[32,64], index: 2, kind: input, shape index: {}]
  %s3 = inlined_call_operand.vmem [shape: f32[1,64], index: 3, kind: input, shape index: {}]
  %s4 = inlined_call_operand.vmem [shape: f32[1,64], index: 4, kind: input, shape index: {}]
  %s5 = inlined_call_operand.vmem [shape: bf16[2,16,64], index: 5, kind: output, shape index: {}]
  %s6 = sld [smem:[#allocation0]]
  $region30: #{openunmix_forward.8} parent=0
    _
  %s8 = ssub.s32 1, %s6
  %s9 = scalar_select 0, %s8, %s6
  // Predicated region
  $region2: #{openunmix_forward.8} parent=0 // pred_check
    _
  $region3: #{openunmix_forward.8} parent=0 // pred_check_branch
    %11 = sbr.rel (0) target = $region5
  $region4: #{openunmix_forward.8} parent=0 // pred_region
    _
  $region5: #{openunmix_forward.8} parent=0 // pred_fallthru
    _
  // Predicated region
  $region6: #{openunmix_forward.8} parent=0 // pred_check
    _
  $region7: #{openunmix_forward.8} parent=0 // pred_check_branch
    %13 = sbr.rel (0) target = $region9
  $region8: #{openunmix_forward.8} parent=0 // pred_region
    _
  $region9: #{openunmix_forward.8} parent=0 // pred_fallthru
    _
  // Predicated region
  $region10: #{openunmix_forward.8} parent=0 // pred_check
    _
  $region11: #{openunmix_forward.8} parent=0 // pred_check_branch
    %15 = sbr.rel (0) target = $region13
  $region12: #{openunmix_forward.8} parent=0 // pred_region
    _
  $region13: #{openunmix_forward.8} parent=0 // pred_fallthru
    _
  // Predicated region
  $region14: #{openunmix_forward.8} parent=0 // pred_check
    _
  $region15: #{openunmix_forward.8} parent=0 // pred_check_branch
    %17 = sbr.rel (0) target = $region17
  $region16: #{openunmix_forward.8} parent=0 // pred_region
    _
  $region17: #{openunmix_forward.8} parent=0 // pred_fallthru
    _
  // Predicated region
  $region18: #{openunmix_forward.8} parent=0 // pred_check
    _
  $region19: #{openunmix_forward.8} parent=0 // pred_check_branch
    %19 = sbr.rel (0) target = $region21
  $region20: #{openunmix_forward.8} parent=0 // pred_region
    _
  $region21: #{openunmix_forward.8} parent=0 // pred_fallthru
    _
  %v21 = vld [vmem:[%s0] sm:$0xff]
  %v22 = vld [vmem:[%s0 + $0x8] sm:$0xff]
  %v23 = vpack.c.bf16 %v22, %v21
  %v24 = vld [vmem:[%s1] sm:$0xf]
  %v25 = vld [vmem:[%s1 + $0x4] sm:$0xf]
  %v26 = vld [vmem:[%s1 + $0x8] sm:$0xf]
  %v27 = vld [vmem:[%s1 + $0xc] sm:$0xf]
  %v28 = vld [vmem:[%s3] sm:$0x1]
  %v30 = vperm.slane %v28, 0
  %v36 = vunpack.c.l.b16 %v24
  %v37 = vunpack.c.l.b16 %v25
  %v38 = vunpack.c.l.b16 %v26
  %v39 = vunpack.c.l.b16 %v27
  %v40 = vpack.c.b16 %v37, %v36
  %v41 = vpack.c.b16 %v39, %v38
  %vm44 = vcmask 261120
  %v46 = vsel %vm44, %v23, 0
  %48 = vmatpush.bf16.msra.mxu0 0
  %49 = vmatpush.bf16.msra.mxu0 0
  %50 = vmatpush.bf16.msra.mxu0 0
  %51 = vmatpush.bf16.msra.mxu0 0
  %52 = vmatpush.bf16.msra.mxu0 0
  %53 = vmatpush.bf16.msra.mxu0 0
  %54 = vmatpush.bf16.msra.mxu0 %v41
  %55 = vmatpush.bf16.msra.mxu0 %v40
  %56 = vmatmul.bf16.gmra.mxu0 %v46
  %v57 = vpop.f32.mrf.mxu0
  %v58 = vadd.f32 %v30, %v57
  %v59 = vpop.f32.mrf.mxu0
  %v60 = vadd.f32 %v30, %v59
  %61 = vdwg.mxu0
  %v62 = vpack.c.bf16 %v58, %v58
  %v63 = vpack.c.bf16 %v60, %v60
  %vm64 = vcmask 519168
  %65 = vst.msk [vmem:[%s5] sm:$0xf] %vm64, %v62
  %66 = vst.msk [vmem:[%s5 + $0x4] sm:$0xf] %vm64, %v63
  %v67 = vld [vmem:[%s2] sm:$0xf]
  %v68 = vld [vmem:[%s2 + $0x4] sm:$0xf]
  %v69 = vld [vmem:[%s2 + $0x8] sm:$0xf]
  %v70 = vld [vmem:[%s2 + $0xc] sm:$0xf]
  %v71 = vld [vmem:[%s4] sm:$0x1]
  %v73 = vperm.slane %v71, 0
  %v79 = vunpack.c.l.b16 %v67
  %v80 = vunpack.c.l.b16 %v68
  %v81 = vunpack.c.l.b16 %v69
  %v82 = vunpack.c.l.b16 %v70
  %v83 = vpack.c.b16 %v80, %v79
  %v84 = vpack.c.b16 %v82, %v81
  %87 = vmatpush.bf16.msra.mxu0 0
  %88 = vmatpush.bf16.msra.mxu0 0
  %89 = vmatpush.bf16.msra.mxu0 0
  %90 = vmatpush.bf16.msra.mxu0 0
  %91 = vmatpush.bf16.msra.mxu0 0
  %92 = vmatpush.bf16.msra.mxu0 0
  %93 = vmatpush.bf16.msra.mxu0 %v84
  %94 = vmatpush.bf16.msra.mxu0 %v83
  %95 = vmatmul.bf16.gmra.mxu0 %v46
  %v96 = vpop.f32.mrf.mxu0
  %v97 = vadd.f32 %v73, %v96
  %v98 = vpop.f32.mrf.mxu0
  %v99 = vadd.f32 %v73, %v98
  %100 = vdwg.mxu0
  %v101 = vpack.c.bf16 %v97, %v97
  %v102 = vpack.c.bf16 %v99, %v99
  %s103 = scalar_lea.vmem %s5, 8
  %104 = vst.msk [vmem:[%s103] sm:$0xf] %vm64, %v101
  %105 = vst.msk [vmem:[%s103 + $0x4] sm:$0xf] %vm64, %v102
  // Predicated region
  $region22: #{openunmix_forward.8} parent=0 // pred_check
    _
  $region23: #{openunmix_forward.8} parent=0 // pred_check_branch
    %107 = sbr.rel (0) target = $region25
  $region24: #{openunmix_forward.8} parent=0 // pred_region
    _
  $region25: #{openunmix_forward.8} parent=0 // pred_fallthru
    _
  // Predicated region
  $region26: #{openunmix_forward.8} parent=0 // pred_check
    _
  $region27: #{openunmix_forward.8} parent=0 // pred_check_branch
    %109 = sbr.rel (0) target = $region29
  $region28: #{openunmix_forward.8} parent=0 // pred_region
    _
  $region29: #{openunmix_forward.8} parent=0 // pred_fallthru
    _

// kernel: openunmix_forward.10
$region0: #{openunmix_forward.10}
  #allocation0 [shape = 'u32[]', space=smem, size = 0x4, offset = 0x4, fixed_abs, tag = 'smem constant byte address 0x4 - core index']
  #allocation1 [shape = 'u32[72,128]{1,0:T(1,128)}', space=vmem, size = 0x9000, scoped, tag = 'internal scratch']
  %s0 = inlined_call_operand.vmem [shape: bf16[2,16,16], index: 0, kind: input, shape index: {}]
  %s1 = inlined_call_operand.vmem [shape: bf16[16,64], index: 1, kind: input, shape index: {}]
  %s2 = inlined_call_operand.vmem [shape: bf16[16,64], index: 2, kind: input, shape index: {}]
  %s3 = inlined_call_operand.vmem [shape: bf16[16,64], index: 3, kind: input, shape index: {}]
  %s4 = inlined_call_operand.vmem [shape: bf16[16,64], index: 4, kind: input, shape index: {}]
  %s5 = inlined_call_operand.vmem [shape: f32[1,64], index: 5, kind: input, shape index: {}]
  %s6 = inlined_call_operand.vmem [shape: f32[1,64], index: 6, kind: input, shape index: {}]
  %s7 = inlined_call_operand.vmem [shape: bf16[2,16,64], index: 7, kind: output, shape index: {}]
  %s8 = sld [smem:[#allocation0]]
  $region38: #{openunmix_forward.10} parent=0
    _
  %s10 = ssub.s32 1, %s8
  %s11 = scalar_select 0, %s10, %s8
  // Predicated region
  $region2: #{openunmix_forward.10} parent=0 // pred_check
    _
  $region3: #{openunmix_forward.10} parent=0 // pred_check_branch
    %13 = sbr.rel (0) target = $region5
  $region4: #{openunmix_forward.10} parent=0 // pred_region
    _
  $region5: #{openunmix_forward.10} parent=0 // pred_fallthru
    _
  // Predicated region
  $region6: #{openunmix_forward.10} parent=0 // pred_check
    _
  $region7: #{openunmix_forward.10} parent=0 // pred_check_branch
    %15 = sbr.rel (0) target = $region9
  $region8: #{openunmix_forward.10} parent=0 // pred_region
    _
  $region9: #{openunmix_forward.10} parent=0 // pred_fallthru
    _
  // Predicated region
  $region10: #{openunmix_forward.10} parent=0 // pred_check
    _
  $region11: #{openunmix_forward.10} parent=0 // pred_check_branch
    %17 = sbr.rel (0) target = $region13
  $region12: #{openunmix_forward.10} parent=0 // pred_region
    _
  $region13: #{openunmix_forward.10} parent=0 // pred_fallthru
    _
  // Predicated region
  $region14: #{openunmix_forward.10} parent=0 // pred_check
    _
  $region15: #{openunmix_forward.10} parent=0 // pred_check_branch
    %19 = sbr.rel (0) target = $region17
  $region16: #{openunmix_forward.10} parent=0 // pred_region
    _
  $region17: #{openunmix_forward.10} parent=0 // pred_fallthru
    _
  // Predicated region
  $region18: #{openunmix_forward.10} parent=0 // pred_check
    _
  $region19: #{openunmix_forward.10} parent=0 // pred_check_branch
    %21 = sbr.rel (0) target = $region21
  $region20: #{openunmix_forward.10} parent=0 // pred_region
    _
  $region21: #{openunmix_forward.10} parent=0 // pred_fallthru
    _
  // Predicated region
  $region22: #{openunmix_forward.10} parent=0 // pred_check
    _
  $region23: #{openunmix_forward.10} parent=0 // pred_check_branch
    %23 = sbr.rel (0) target = $region25
  $region24: #{openunmix_forward.10} parent=0 // pred_region
    _
  $region25: #{openunmix_forward.10} parent=0 // pred_fallthru
    _
  // Predicated region
  $region26: #{openunmix_forward.10} parent=0 // pred_check
    _
  $region27: #{openunmix_forward.10} parent=0 // pred_check_branch
    %25 = sbr.rel (0) target = $region29
  $region28: #{openunmix_forward.10} parent=0 // pred_region
    _
  $region29: #{openunmix_forward.10} parent=0 // pred_fallthru
    _
  %v27 = vld [vmem:[%s0] sm:$0xf]
  %v28 = vld [vmem:[%s0 + $0x4] sm:$0xf]
  %s29 = scalar_lea.vmem %s0, 8
  %v30 = vld [vmem:[%s29] sm:$0xf]
  %v31 = vld [vmem:[%s29 + $0x4] sm:$0xf]
  %v32 = vld [vmem:[%s1] sm:$0xf]
  %v33 = vld [vmem:[%s1 + $0x4] sm:$0xf]
  %v34 = vld [vmem:[%s2] sm:$0xf]
  %v35 = vld [vmem:[%s2 + $0x4] sm:$0xf]
  %v38 = vunpack.c.l.b16 %v30
  %v39 = vunpack.c.l.b16 %v31
  %v40 = vpack.c.b16 %v39, %v38
  %v43 = vunpack.c.l.b16 %v34
  %v44 = vunpack.c.l.b16 %v35
  %v45 = vpack.c.b16 %v44, %v43
  %vm47 = vcmask 130048
  %v49 = vsel %vm47, %v40, 0
  %51 = vmatpush.bf16.msra.mxu0 0
  %52 = vmatpush.bf16.msra.mxu0 0
  %53 = vmatpush.bf16.msra.mxu0 0
  %54 = vmatpush.bf16.msra.mxu0 0
  %55 = vmatpush.bf16.msra.mxu0 0
  %56 = vmatpush.bf16.msra.mxu0 0
  %57 = vmatpush.bf16.msra.mxu0 0
  %58 = vmatpush.bf16.msra.mxu0 %v45
  %59 = vmatmul.bf16.gmra.mxu0 %v49
  %v60 = vpop.f32.mrf.mxu0
  %v61 = vadd.f32 0.0, %v60
  %v62 = vpop.f32.mrf.mxu0
  %v63 = vadd.f32 0.0, %v62
  %64 = vdwg.mxu0
  %v67 = vunpack.c.l.b16 %v27
  %v68 = vunpack.c.l.b16 %v28
  %v69 = vpack.c.b16 %v68, %v67
  %v72 = vunpack.c.l.b16 %v32
  %v73 = vunpack.c.l.b16 %v33
  %v74 = vpack.c.b16 %v73, %v72
  %v77 = vsel %vm47, %v69, 0
  %79 = vmatpush.bf16.msra.mxu0 0
  %80 = vmatpush.bf16.msra.mxu0 0
  %81 = vmatpush.bf16.msra.mxu0 0
  %82 = vmatpush.bf16.msra.mxu0 0
  %83 = vmatpush.bf16.msra.mxu0 0
  %84 = vmatpush.bf16.msra.mxu0 0
  %85 = vmatpush.bf16.msra.mxu0 0
  %86 = vmatpush.bf16.msra.mxu0 %v74
  %87 = vmatmul.bf16.gmra.mxu0 %v77
  %v88 = vpop.f32.mrf.mxu0
  %v89 = vadd.f32 %v61, %v88
  %v90 = vpop.f32.mrf.mxu0
  %v91 = vadd.f32 %v63, %v90
  %92 = vdwg.mxu0
  %v93 = vld [vmem:[%s5] sm:$0x1]
  %v95 = vperm.slane %v93, 0
  %v97 = vadd.f32 %v89, %v95
  %v98 = vadd.f32 %v91, %v95
  %v99 = vld [vmem:[%s3] sm:$0xf]
  %v100 = vld [vmem:[%s3 + $0x4] sm:$0xf]
  %v101 = vld [vmem:[%s4] sm:$0xf]
  %v102 = vld [vmem:[%s4 + $0x4] sm:$0xf]
  %v105 = vunpack.c.l.b16 %v101
  %v106 = vunpack.c.l.b16 %v102
  %v107 = vpack.c.b16 %v106, %v105
  %109 = vmatpush.bf16.msra.mxu0 0
  %110 = vmatpush.bf16.msra.mxu0 0
  %111 = vmatpush.bf16.msra.mxu0 0
  %112 = vmatpush.bf16.msra.mxu0 0
  %113 = vmatpush.bf16.msra.mxu0 0
  %114 = vmatpush.bf16.msra.mxu0 0
  %115 = vmatpush.bf16.msra.mxu0 0
  %116 = vmatpush.bf16.msra.mxu0 %v107
  %117 = vmatmul.bf16.gmra.mxu0 %v49
  %v118 = vpop.f32.mrf.mxu0
  %v119 = vadd.f32 0.0, %v118
  %v120 = vpop.f32.mrf.mxu0
  %v121 = vadd.f32 0.0, %v120
  %122 = vdwg.mxu0
  %v125 = vunpack.c.l.b16 %v99
  %v126 = vunpack.c.l.b16 %v100
  %v127 = vpack.c.b16 %v126, %v125
  %129 = vmatpush.bf16.msra.mxu0 0
  %130 = vmatpush.bf16.msra.mxu0 0
  %131 = vmatpush.bf16.msra.mxu0 0
  %132 = vmatpush.bf16.msra.mxu0 0
  %133 = vmatpush.bf16.msra.mxu0 0
  %134 = vmatpush.bf16.msra.mxu0 0
  %135 = vmatpush.bf16.msra.mxu0 0
  %136 = vmatpush.bf16.msra.mxu0 %v127
  %137 = vmatmul.bf16.gmra.mxu0 %v77
  %v138 = vpop.f32.mrf.mxu0
  %v139 = vadd.f32 %v119, %v138
  %v140 = vpop.f32.mrf.mxu0
  %v141 = vadd.f32 %v121, %v140
  %142 = vdwg.mxu0
  %v143 = vld [vmem:[%s6] sm:$0x1]
  %v145 = vperm.slane %v143, 0
  %v147 = vadd.f32 %v139, %v145
  %v148 = vadd.f32 %v141, %v145
  %v149 = vpack.c.bf16 %v97, %v97
  %v150 = vpack.c.bf16 %v98, %v98
  %vm151 = vcmask 519168
  %152 = vst.msk [vmem:[%s7] sm:$0xf] %vm151, %v149
  %153 = vst.msk [vmem:[%s7 + $0x4] sm:$0xf] %vm151, %v150
  %v154 = vpack.c.bf16 %v147, %v147
  %v155 = vpack.c.bf16 %v148, %v148
  %s156 = scalar_lea.vmem %s7, 8
  %157 = vst.msk [vmem:[%s156] sm:$0xf] %vm151, %v154
  %158 = vst.msk [vmem:[%s156 + $0x4] sm:$0xf] %vm151, %v155
  // Predicated region
  $region30: #{openunmix_forward.10} parent=0 // pred_check
    _
  $region31: #{openunmix_forward.10} parent=0 // pred_check_branch
    %160 = sbr.rel (0) target = $region33
  $region32: #{openunmix_forward.10} parent=0 // pred_region
    _
  $region33: #{openunmix_forward.10} parent=0 // pred_fallthru
    _
  // Predicated region
  $region34: #{openunmix_forward.10} parent=0 // pred_check
    _
  $region35: #{openunmix_forward.10} parent=0 // pred_check_branch
    %162 = sbr.rel (0) target = $region37
  $region36: #{openunmix_forward.10} parent=0 // pred_region
    _
  $region37: #{openunmix_forward.10} parent=0 // pred_fallthru
    _

// kernel: openunmix_forward.7
$region0: #{openunmix_forward.7}
  #allocation0 [shape = 'u32[]', space=smem, size = 0x4, offset = 0x4, fixed_abs, tag = 'smem constant byte address 0x4 - core index']
  #allocation1 [shape = 'u32[72,128]{1,0:T(1,128)}', space=vmem, size = 0x9000, scoped, tag = 'internal scratch']
  %s0 = inlined_call_operand.vmem [shape: f32[16,16], index: 0, kind: input, shape index: {}]
  %s1 = inlined_call_operand.vmem [shape: f32[1,16], index: 1, kind: input, shape index: {}]
  %s2 = inlined_call_operand.vmem [shape: f32[1,16], index: 2, kind: input, shape index: {}]
  %s3 = inlined_call_operand.vmem [shape: bf16[16,32], index: 3, kind: input, shape index: {}]
  %s4 = inlined_call_operand.vmem [shape: f32[1,32], index: 4, kind: input, shape index: {}]
  %s5 = inlined_call_operand.vmem [shape: f32[1,32], index: 5, kind: input, shape index: {}]
  %s6 = inlined_call_operand.vmem [shape: f32[16,32], index: 6, kind: output, shape index: {}]
  %s7 = sld [smem:[#allocation0]]
  $region34: #{openunmix_forward.7} parent=0
    _
  %s9 = ssub.s32 1, %s7
  %s10 = scalar_select 0, %s9, %s7
  // Predicated region
  $region2: #{openunmix_forward.7} parent=0 // pred_check
    _
  $region3: #{openunmix_forward.7} parent=0 // pred_check_branch
    %12 = sbr.rel (0) target = $region5
  $region4: #{openunmix_forward.7} parent=0 // pred_region
    _
  $region5: #{openunmix_forward.7} parent=0 // pred_fallthru
    _
  // Predicated region
  $region6: #{openunmix_forward.7} parent=0 // pred_check
    _
  $region7: #{openunmix_forward.7} parent=0 // pred_check_branch
    %14 = sbr.rel (0) target = $region9
  $region8: #{openunmix_forward.7} parent=0 // pred_region
    _
  $region9: #{openunmix_forward.7} parent=0 // pred_fallthru
    _
  // Predicated region
  $region10: #{openunmix_forward.7} parent=0 // pred_check
    _
  $region11: #{openunmix_forward.7} parent=0 // pred_check_branch
    %16 = sbr.rel (0) target = $region13
  $region12: #{openunmix_forward.7} parent=0 // pred_region
    _
  $region13: #{openunmix_forward.7} parent=0 // pred_fallthru
    _
  // Predicated region
  $region14: #{openunmix_forward.7} parent=0 // pred_check
    _
  $region15: #{openunmix_forward.7} parent=0 // pred_check_branch
    %18 = sbr.rel (0) target = $region17
  $region16: #{openunmix_forward.7} parent=0 // pred_region
    _
  $region17: #{openunmix_forward.7} parent=0 // pred_fallthru
    _
  // Predicated region
  $region18: #{openunmix_forward.7} parent=0 // pred_check
    _
  $region19: #{openunmix_forward.7} parent=0 // pred_check_branch
    %20 = sbr.rel (0) target = $region21
  $region20: #{openunmix_forward.7} parent=0 // pred_region
    _
  $region21: #{openunmix_forward.7} parent=0 // pred_fallthru
    _
  // Predicated region
  $region22: #{openunmix_forward.7} parent=0 // pred_check
    _
  $region23: #{openunmix_forward.7} parent=0 // pred_check_branch
    %22 = sbr.rel (0) target = $region25
  $region24: #{openunmix_forward.7} parent=0 // pred_region
    _
  $region25: #{openunmix_forward.7} parent=0 // pred_fallthru
    _
  %v24 = vld [vmem:[%s0] sm:$0xff]
  %v25 = vld [vmem:[%s0 + $0x8] sm:$0xff]
  %v26 = vld [vmem:[%s1] sm:$0x1]
  %v28 = vperm.slane %v26, 0
  %v30 = vsub.f32 %v24, %v28
  %v31 = vsub.f32 %v25, %v28
  %v32 = vld [vmem:[%s2] sm:$0x1]
  %v34 = vperm.slane %v32, 0
  %v36 = vmul.f32 %v30, %v34
  %v37 = vmul.f32 %v31, %v34
  %v38 = vpack.c.bf16 %v37, %v36
  %v39 = vld [vmem:[%s3] sm:$0xf]
  %v40 = vld [vmem:[%s3 + $0x4] sm:$0xf]
  %v43 = vunpack.c.l.b16 %v39
  %v44 = vunpack.c.l.b16 %v40
  %v45 = vpack.c.b16 %v44, %v43
  %vm47 = vcmask 130048
  %v49 = vsel %vm47, %v38, 0
  %51 = vmatpush.bf16.msra.mxu0 0
  %52 = vmatpush.bf16.msra.mxu0 0
  %53 = vmatpush.bf16.msra.mxu0 0
  %54 = vmatpush.bf16.msra.mxu0 0
  %55 = vmatpush.bf16.msra.mxu0 0
  %56 = vmatpush.bf16.msra.mxu0 0
  %57 = vmatpush.bf16.msra.mxu0 0
  %58 = vmatpush.bf16.msra.mxu0 %v45
  %59 = vmatmul.bf16.gmra.mxu0 %v49
  %v60 = vpop.f32.mrf.mxu0
  %v61 = vadd.f32 0.0, %v60
  %v62 = vpop.f32.mrf.mxu0
  %v63 = vadd.f32 0.0, %v62
  %64 = vdwg.mxu0
  %v65 = vld [vmem:[%s4] sm:$0x1]
  %v67 = vperm.slane %v65, 0
  %v69 = vmul.f32 %v61, %v67
  %v70 = vmul.f32 %v63, %v67
  %v71 = vld [vmem:[%s5] sm:$0x1]
  %v73 = vperm.slane %v71, 0
  %v75 = vadd.f32 %v69, %v73
  %v76 = vadd.f32 %v70, %v73
  %v77 = vtanh.pop %v75
  %v78 = vtanh.pop %v76
  %vm79 = vcmask 261120
  %80 = vst.msk [vmem:[%s6] sm:$0xff] %vm79, %v77
  %81 = vst.msk [vmem:[%s6 + $0x8] sm:$0xff] %vm79, %v78
  // Predicated region
  $region26: #{openunmix_forward.7} parent=0 // pred_check
    _
  $region27: #{openunmix_forward.7} parent=0 // pred_check_branch
    %83 = sbr.rel (0) target = $region29
  $region28: #{openunmix_forward.7} parent=0 // pred_region
    _
  $region29: #{openunmix_forward.7} parent=0 // pred_fallthru
    _
  // Predicated region
  $region30: #{openunmix_forward.7} parent=0 // pred_check
    _
  $region31: #{openunmix_forward.7} parent=0 // pred_check_branch
    %85 = sbr.rel (0) target = $region33
  $region32: #{openunmix_forward.7} parent=0 // pred_region
    _
  $region33: #{openunmix_forward.7} parent=0 // pred_fallthru
    _

// kernel: tile.33
$region0: #{tile.33}
  #allocation0 [shape = 's32[1]{0}', space=sflag, size = 0x4, scoped, tag = 'scoped memory for tile.33']
  %s0 = inlined_call_operand.vmem [shape: f32[16], index: 0, kind: input, shape index: {}]
  %s1 = inlined_call_operand.vmem [shape: f32[2,16], index: 1, kind: output, shape index: {}]
  // Predicated region
  $region2: #{tile.33} parent=0 // pred_check
    _
  $region3: #{tile.33} parent=0 // pred_check_branch
    %3 = sbr.rel (0) target = $region5
  $region4: #{tile.33} parent=0 // pred_region
    _
  $region5: #{tile.33} parent=0 // pred_fallthru
    _
  %v4 = vld [vmem:[%s0] ss:$0 sm:$0xff]
  %5 = vst [vmem:[%s1] sm:$0x3] %v4

// kernel: tile.34
$region0: #{tile.34}
  %s0 = inlined_call_operand.vmem [shape: f32[2,16], index: 0, kind: input, shape index: {}]
  %s1 = inlined_call_operand.vmem [shape: f32[32], index: 1, kind: output, shape index: {}]
  $region1: #{tile.34} parent=0
    #allocation0 [shape = 'u8[4096]{0}', space=vmem, size = 0x1000, scoped, tag = 'scoped mem for output reshape']
    #allocation1 [shape = 'u8[4096]{0}', space=vmem, size = 0x1000, scoped, tag = 'scoped mem for input reshape']
    %s3 = ssub.s32 4, 1
    %v4 = vld [vmem:[%s0] sm:%s3]
    %5 = vst [vmem:[#allocation1] sm:%s3] %v4
    %v6 = vld [vmem:[#allocation1] sm:$0x1]
    %vm7 = vcmask 130048
    %8 = vst.msk [vmem:[#allocation0] sm:$0x1] %vm7, %v6
    %s9 = scalar_lea.vmem [#allocation1], 1
    %v10 = vld [vmem:[%s9] sm:$0x1]
    %11 = vrot.lane.b32.xlu0 %v10, 16
    %v12 = vpop.permute.xlu0 %11
    %vm13 = vcmask 261248
    %14 = vst.msk [vmem:[#allocation0] sm:$0x1] %vm13, %v12
    %s16 = ssub.s32 2, 1
    %v17 = vld [vmem:[#allocation0] sm:%s16]
    %s19 = ssub.s32 2, 1
    %20 = vst [vmem:[%s1] sm:%s19] %v17

// kernel: openunmix_forward.9
$region0: #{openunmix_forward.9}
  #allocation0 [shape = 'u32[]', space=smem, size = 0x4, offset = 0x4, fixed_abs, tag = 'smem constant byte address 0x4 - core index']
  #allocation1 [shape = 'u32[72,128]{1,0:T(1,128)}', space=vmem, size = 0x9000, scoped, tag = 'internal scratch']
  #allocation2 [shape = 'f32[2,16]{1,0:T(2,128)}', space=vmem, size = 0x400, scoped, tag = 'scratch operand']
  #allocation3 [shape = 'f32[2,16]{1,0:T(2,128)}', space=vmem, size = 0x400, scoped, tag = 'scratch operand']
  %s0 = inlined_call_operand.vmem [shape: bf16[2,8,2,64], index: 0, kind: input, shape index: {}]
  %s1 = inlined_call_operand.vmem [shape: bf16[2,16,64], index: 1, kind: input, shape index: {}]
  %s2 = inlined_call_operand.vmem [shape: bf16[2,8,2,16], index: 2, kind: output, shape index: {}]
  %s3 = sld [smem:[#allocation0]]
  $region45: #{openunmix_forward.9} parent=0
    _
  %s5 = ssub.s32 1, %s3
  %s6 = scalar_select 0, %s5, %s3
  loop: start=0, step=1, limit=4
  $region2: #{openunmix_forward.9} parent=0 // loop_pre_header
    _
  $region3: #{openunmix_forward.9} parent=0 // loop_header
    %s8 = sphi 0, %s12
    %p9 = scmp.ge.s32.totalorder %s8, 4
    %s15 = sphi 0, %s27
    %s16 = sphi 0, %s23
    %s17 = sphi 0, %s15
    %s18 = sphi 0, %s16
    %s19 = sphi 0, %s17
    %s20 = sphi 0, %s18
    %s38 = sphi 0, %s40
    %s41 = sphi 0, %s38
    %s42 = sphi 0, %s41
    %s58 = sphi 0, %s42
    %s64 = sphi 0, %s66
    %s67 = sphi 0, %s64
    %s68 = sphi 0, %s67
    %s84 = sphi 0, %s68
    %s98 = sphi 0, %s100
    %s101 = sphi 0, %s98
    %s102 = sphi 0, %s101
    %s118 = sphi 0, %s102
  $region4: #{openunmix_forward.9} parent=0 // loop_header_branch
    %11 = sbr.rel (%p9) target = $region8
  $region5: #{openunmix_forward.9} parent=0 // loop_body
    %s13 = ssub.s32 %s8, 1
    %s14 = ssub.s32 %s8, 2
    %s21 = sadd.s32 1, %s16
    %p22 = scmp.ge.s32.totalorder %s21, 1
    %s23 = scalar_select %p22, 0, %s21
    %s24 = sadd.s32 1, %s15
    %s25 = scalar_select %p22, %s24, %s15
    %p26 = scmp.ge.s32.totalorder %s25, 2
    %s27 = scalar_select %p26, 0, %s25
    %s28 = smul.u32 %s15, 2
    %s29 = ssub.s32 1, %s28
    %s30 = smul.u32 %s29, %s16
    %s31 = smul.u32 %s27, 2
    %s32 = ssub.s32 1, %s31
    %s33 = smul.u32 %s32, %s23
    %s34 = ssub.s32 %s15, %s27
    %s35 = ssub.s32 %s30, %s33
    %s36 = sor.u32 %s34, %s35
    %p37 = scmp.eq.s32.totalorder %s36, 0
    %s39 = sadd.s32 %s38, 1
    %s40 = scalar_select %p37, %s38, %s39
    %p43 = pneg %p37
    %p44 = scmp.eq.s32.totalorder %s8, 1
    %p45 = por %p43, %p44
    %p46 = scmp.ne.s32.totalorder %s38, %s41
    %p47 = scmp.eq.s32.totalorder %s8, 0
    %p48 = por %p46, %p47
    %p49 = scmp.ne.s32.totalorder %s38, %s41
    %p50 = scmp.eq.s32.totalorder %s13, 1
    %p51 = por %p49, %p50
    %p52 = scmp.ne.s32.totalorder %s41, %s42
    %p53 = scmp.eq.s32.totalorder %s13, 0
    %p54 = por %p52, %p53
    %p55 = scmp.ne.s32.totalorder %s41, %s42
    %p56 = scmp.eq.s32.totalorder %s14, 1
    %p57 = por %p55, %p56
    %p59 = scmp.ne.s32.totalorder %s42, %s58
    %p60 = scmp.eq.s32.totalorder %s14, 0
    %p61 = por %p59, %p60
    %s62 = ssub.s32 %s15, %s27
    %p63 = scmp.eq.s32.totalorder %s62, 0
    %s65 = sadd.s32 %s64, 1
    %s66 = scalar_select %p63, %s64, %s65
    %p69 = pneg %p63
    %p70 = scmp.eq.s32.totalorder %s8, 1
    %p71 = por %p69, %p70
    %p72 = scmp.ne.s32.totalorder %s64, %s67
    %p73 = scmp.eq.s32.totalorder %s8, 0
    %p74 = por %p72, %p73
    %p75 = scmp.ne.s32.totalorder %s64, %s67
    %p76 = scmp.eq.s32.totalorder %s13, 1
    %p77 = por %p75, %p76
    %p78 = scmp.ne.s32.totalorder %s67, %s68
    %p79 = scmp.eq.s32.totalorder %s13, 0
    %p80 = por %p78, %p79
    %p81 = scmp.ne.s32.totalorder %s67, %s68
    %p82 = scmp.eq.s32.totalorder %s14, 1
    %p83 = por %p81, %p82
    %p85 = scmp.ne.s32.totalorder %s68, %s84
    %p86 = scmp.eq.s32.totalorder %s14, 0
    %p87 = por %p85, %p86
    %s88 = smul.u32 %s15, 2
    %s89 = ssub.s32 1, %s88
    %s90 = smul.u32 %s89, %s16
    %s91 = smul.u32 %s27, 2
    %s92 = ssub.s32 1, %s91
    %s93 = smul.u32 %s92, %s23
    %s94 = ssub.s32 %s15, %s27
    %s95 = ssub.s32 %s90, %s93
    %s96 = sor.u32 %s94, %s95
    %p97 = scmp.eq.s32.totalorder %s96, 0
    %s99 = sadd.s32 %s98, 1
    %s100 = scalar_select %p97, %s98, %s99
    %p103 = pneg %p97
    %p104 = scmp.eq.s32.totalorder %s8, 1
    %p105 = por %p103, %p104
    %p106 = scmp.ne.s32.totalorder %s98, %s101
    %p107 = scmp.eq.s32.totalorder %s8, 0
    %p108 = por %p106, %p107
    %p109 = scmp.ne.s32.totalorder %s98, %s101
    %p110 = scmp.eq.s32.totalorder %s13, 1
    %p111 = por %p109, %p110
    %p112 = scmp.ne.s32.totalorder %s101, %s102
    %p113 = scmp.eq.s32.totalorder %s13, 0
    %p114 = por %p112, %p113
    %p115 = scmp.ne.s32.totalorder %s101, %s102
    %p116 = scmp.eq.s32.totalorder %s14, 1
    %p117 = por %p115, %p116
    %p119 = scmp.ne.s32.totalorder %s102, %s118
    %p120 = scmp.eq.s32.totalorder %s14, 0
    %p121 = por %p119, %p120
    %p122 = scmp.le.s32.totalorder 1, %s8
    %p123 = scmp.lt.s32.totalorder %s8, 3
    %p124 = pnand %p122, %p123
    %p125 = pneg %p124
    // Predicated region
    $region9: #{openunmix_forward.9} parent=5 // pred_check
      _
    $region10: #{openunmix_forward.9} parent=5 // pred_check_branch
      %127 = sbr.rel (%p124) target = $region12
    $region11: #{openunmix_forward.9} parent=5 // pred_region
      %s128 = ssub.s32 %s8, 1
    $region12: #{openunmix_forward.9} parent=5 // pred_fallthru
      _
    %p129 = scmp.lt.s32.totalorder %s8, 2
    // Predicated region
    $region13: #{openunmix_forward.9} parent=5 // pred_check
      %p130 = pneg %p129
    $region14: #{openunmix_forward.9} parent=5 // pred_check_branch
      %132 = sbr.rel (%p130) target = $region16
    $region15: #{openunmix_forward.9} parent=5 // pred_region
      // Predicated region
      $region17: #{openunmix_forward.9} parent=15 // pred_check
        %p133 = pneg %p48
      $region18: #{openunmix_forward.9} parent=15 // pred_check_branch
        %135 = sbr.rel (%p133) target = $region20
      $region19: #{openunmix_forward.9} parent=15 // pred_region
        %s136 = smul.u32 %s15, 2
        %s137 = ssub.s32 1, %s136
        %s138 = smul.u32 %s137, %s16
        %s139 = smul.u32 8, %s138
        %p140 = scmp.lt.s32.totalorder %s15, 1
        %s141 = scalar_select %p140, %s15, 1
        %p142 = scmp.lt.s32.totalorder %s139, 7
        %s143 = scalar_select %p142, %s139, 7
        %s144 = smul.addr %s141, 8
        %s145 = sadd.s32 %s143, %s144
        %s146 = scalar_lea.vmem %s0, %s145
        %s147 = smul.u32 %s15, 2
        %s148 = ssub.s32 1, %s147
        %s149 = smul.u32 %s148, %s16
        %s150 = smul.u32 8, %s149
      $region20: #{openunmix_forward.9} parent=15 // pred_fallthru
        _
      // Predicated region
      $region21: #{openunmix_forward.9} parent=15 // pred_check
        %p151 = pneg %p74
      $region22: #{openunmix_forward.9} parent=15 // pred_check_branch
        %153 = sbr.rel (%p151) target = $region24
      $region23: #{openunmix_forward.9} parent=15 // pred_region
        %p154 = scmp.lt.s32.totalorder %s15, 1
        %s155 = scalar_select %p154, %s15, 1
        %s156 = smul.addr %s155, 2
        %s157 = smul.addr %s156, 4
        %s158 = scalar_lea.vmem %s1, %s157
      $region24: #{openunmix_forward.9} parent=15 // pred_fallthru
        _
    $region16: #{openunmix_forward.9} parent=5 // pred_fallthru
      _
    %p159 = scmp.le.s32.totalorder 1, %s8
    %p160 = scmp.lt.s32.totalorder %s8, 3
    %p161 = pnand %p159, %p160
    %p162 = pneg %p161
    // Predicated region
    $region25: #{openunmix_forward.9} parent=5 // pred_check
      _
    $region26: #{openunmix_forward.9} parent=5 // pred_check_branch
      %164 = sbr.rel (%p161) target = $region28
    $region27: #{openunmix_forward.9} parent=5 // pred_region
      %s165 = ssub.s32 %s8, 1
      %s166 = smul.u32 %s17, 2
      %s167 = ssub.s32 1, %s166
      %s168 = smul.u32 %s167, %s18
      %s169 = smul.u32 8, %s168
      %p170 = scmp.lt.s32.totalorder %s17, 1
      %s171 = scalar_select %p170, %s17, 1
      %p172 = scmp.lt.s32.totalorder %s169, 7
      %s173 = scalar_select %p172, %s169, 7
      %s174 = smul.addr %s171, 8
      %s175 = sadd.s32 %s173, %s174
      %s176 = scalar_lea.vmem %s0, %s175
      %p177 = pneg %p54
      %p178 = pneg %p51
      %p179 = scmp.lt.s32.totalorder %s17, 1
      %s180 = scalar_select %p179, %s17, 1
      %s181 = smul.addr %s180, 2
      %s182 = smul.addr %s181, 4
      %s183 = scalar_lea.vmem %s1, %s182
      %p184 = pneg %p80
      %p185 = pneg %p77
      %p186 = pneg %p114
      %p187 = pneg %p111
      %s188 = smul.u32 %s17, 2
      %s189 = ssub.s32 1, %s188
      %s190 = smul.u32 %s189, %s18
      %s191 = smul.u32 8, %s190
      %p192 = scmp.lt.s32.totalorder %s17, 1
      %s193 = scalar_select %p192, %s17, 1
      %p194 = scmp.lt.s32.totalorder %s191, 7
      %s195 = scalar_select %p194, %s191, 7
      %s196 = smul.addr %s193, 8
      %s197 = sadd.s32 %s195, %s196
      %s198 = scalar_lea.vmem %s2, %s197
      %s199 = smul.u32 %s17, 2
      %s200 = ssub.s32 1, %s199
      %s201 = smul.u32 %s200, %s18
      %s202 = smul.u32 8, %s201
      %p203 = scmp.lt.s32.totalorder %s17, 1
      %s204 = scalar_select %p203, %s17, 1
      %p205 = scmp.lt.s32.totalorder %s202, 7
      %s206 = scalar_select %p205, %s202, 7
      %s207 = smul.addr %s204, 8
      %s208 = sadd.s32 %s206, %s207
      %s209 = scalar_lea.vmem %s0, %s208
      %s210 = smul.u32 %s17, 2
      %s211 = ssub.s32 1, %s210
      %s212 = smul.u32 %s211, %s18
      %s213 = smul.u32 8, %s212
      %p214 = scmp.lt.s32.totalorder %s17, 1
      %s215 = scalar_select %p214, %s17, 1
      %s216 = smul.addr %s215, 2
      %s217 = smul.addr %s216, 4
      %s218 = scalar_lea.vmem %s1, %s217
      %s219 = smul.u32 %s17, 2
      %s220 = ssub.s32 1, %s219
      %s221 = smul.u32 %s220, %s18
      %s222 = smul.u32 8, %s221
      %p223 = scmp.lt.s32.totalorder %s17, 1
      %s224 = scalar_select %p223, %s17, 1
      %p225 = scmp.lt.s32.totalorder %s222, 7
      %s226 = scalar_select %p225, %s222, 7
      %s227 = smul.addr %s224, 8
      %s228 = sadd.s32 %s226, %s227
      %s229 = scalar_lea.vmem %s2, %s228
      %s230 = smul.u32 %s17, 2
      %s231 = ssub.s32 1, %s230
      %s232 = smul.u32 %s231, %s18
      %s233 = smul.u32 8, %s232
      %p235 = scmp.eq.s32.totalorder %s18, 0
      // Predicated region
      $region29: #{openunmix_forward.9} parent=27 // pred_check
        %p236 = pneg %p235
      $region30: #{openunmix_forward.9} parent=27 // pred_check_branch
        %238 = sbr.rel (%p236) target = $region32
      $region31: #{openunmix_forward.9} parent=27 // pred_region
        %vm239 = vcmask 123904
        %240 = vst.msk [vmem:[#allocation2] sm:$0x3] %vm239, 0.0
        %241 = vst.msk [vmem:[#allocation3] sm:$0x3] %vm239, 0.0
      $region32: #{openunmix_forward.9} parent=27 // pred_fallthru
        _
      %v242 = vld [vmem:[%s218] sm:$0xf]
      %v243 = vld [vmem:[%s218 + $0x4] sm:$0xf]
      %v244 = vld [vmem:[#allocation2] sm:$0x3]
      %v245 = vld [vmem:[#allocation3] sm:$0x3]
      %s246 = smul.u32 %s17, 7
      %s247 = scalar_lea.vmem %s209, %s246
      %v248 = vld [vmem:[%s247] sm:$0x1]
      %v249 = vunpack.c.l.bf16 %v248
      %v250 = vpack.c.bf16 %v244, %v244
      %v253 = vunpack.c.l.b16 %v242
      %v254 = vunpack.c.l.b16 %v243
      %v255 = vpack.c.b16 %v254, %v253
      %vm257 = vcmask 130048
      %v259 = vsel %vm257, %v250, 0
      %261 = vmatpush.bf16.msra.mxu0 0
      %262 = vmatpush.bf16.msra.mxu0 0
      %263 = vmatpush.bf16.msra.mxu0 0
      %264 = vmatpush.bf16.msra.mxu0 0
      %265 = vmatpush.bf16.msra.mxu0 0
      %266 = vmatpush.bf16.msra.mxu0 0
      %267 = vmatpush.bf16.msra.mxu0 0
      %268 = vmatpush.bf16.msra.mxu0 %v255
      %269 = vmatmul.bf16.gmra.mxu0 %v259
      %v270 = vpop.f32.mrf.mxu0
      %v271 = vadd.f32 0.0, %v270
      %v272 = vpop.f32.mrf.mxu0
      %273 = vdwg.mxu0
      %v274 = vadd.f32 %v249, %v271
      %v275 = vxor.u32 %v274, 2147483648
      %v276 = vmul.f32 %v275, 1.442695
      %v277 = vpow.pop %v276
      %v278 = vadd.f32 %v277, 1.0
      %v279 = vrcp.pop %v278
      %v280 = vmul.f32 %v278, %v279
      %v281 = vsub.f32 1.0, %v280
      %v282 = vmul.f32 %v279, %v281
      %v283 = vadd.f32 %v279, %v282
      %vm284 = vweird.f32 %v278
      %vm285 = vweird.f32 %v279
      %vm286 = vmor %vm284, %vm285
      %v287 = vsel %vm286, %v279, %v283
      %v288 = vand.u32 2147483647, %v278
      %vm289 = vcmp.eq.f32.partialorder %v288, 8.507059e+37
      %v290 = vand.u32 %v278, 2147483648
      %v291 = vor.u32 1.1754944e-38, %v290
      %v292 = vsel %vm289, %v291, %v287
      %v293 = vmul.f32 1.0, %v292
      %v294 = vtanh.pop %v274
      %296 = vrot.lane.b32.xlu0 %v245, 16
      %v297 = vpop.permute.xlu0 %296
      %v299 = vmul.f32 %v293, %v297
      %301 = vrot.lane.b32.xlu0 %v294, 96
      %v302 = vpop.permute.xlu0 %301
      %v304 = vmul.f32 %v293, %v302
      %306 = vrot.lane.b32.xlu0 %v304, 16
      %v307 = vpop.permute.xlu0 %306
      %v309 = vadd.f32 %v299, %v307
      %v310 = vtanh.pop %v309
      %312 = vrot.lane.b32.xlu0 %v310, 32
      %v313 = vpop.permute.xlu0 %312
      %v315 = vmul.f32 %v293, %v313
      %v316 = vpack.c.bf16 %v315, %v315
      %v318 = vrot.slane %v316, 3
      %vm319 = vcmask 1040384
      %v322 = vsel %vm319, %v316, %v318
      %324 = vrot.lane.b32.xlu0 %v322, 80
      %v325 = vpop.permute.xlu0 %324
      %s327 = scalar_lea.vmem %s229, %s246
      %vm328 = vcmask 122880
      %329 = vst.msk [vmem:[%s327] sm:$0x1] %vm328, %v325
      %s330 = smul.u32 %s17, 2
      %s331 = ssub.s32 1, %s330
      %s332 = sadd.s32 %s246, %s331
      %s333 = scalar_lea.vmem %s209, %s332
      %v334 = vld [vmem:[%s333] sm:$0x1]
      %v335 = vunpack.c.l.bf16 %v334
      %v336 = vunpack.c.l.b16 %v316
      %v337 = vpack.c.b16 %v336, %v336
      %338 = vrot.lane.b32.xlu0 %v337, 80
      %v339 = vpop.permute.xlu0 %338
      %v341 = vsel %vm257, %v339, 0
      %343 = vmatpush.bf16.msra.mxu0 0
      %344 = vmatpush.bf16.msra.mxu0 0
      %345 = vmatpush.bf16.msra.mxu0 0
      %346 = vmatpush.bf16.msra.mxu0 0
      %347 = vmatpush.bf16.msra.mxu0 0
      %348 = vmatpush.bf16.msra.mxu0 0
      %349 = vmatpush.bf16.msra.mxu0 0
      %350 = vmatpush.bf16.msra.mxu0 %v255
      %351 = vmatmul.bf16.gmra.mxu0 %v341
      %v352 = vpop.f32.mrf.mxu0
      %v353 = vadd.f32 0.0, %v352
      %v354 = vpop.f32.mrf.mxu0
      %355 = vdwg.mxu0
      %v356 = vadd.f32 %v335, %v353
      %v357 = vxor.u32 %v356, 2147483648
      %v358 = vmul.f32 %v357, 1.442695
      %v359 = vpow.pop %v358
      %v360 = vadd.f32 %v359, 1.0
      %v361 = vrcp.pop %v360
      %v362 = vmul.f32 %v360, %v361
      %v363 = vsub.f32 1.0, %v362
      %v364 = vmul.f32 %v361, %v363
      %v365 = vadd.f32 %v361, %v364
      %vm366 = vweird.f32 %v360
      %vm367 = vweird.f32 %v361
      %vm368 = vmor %vm366, %vm367
      %v369 = vsel %vm368, %v361, %v365
      %v370 = vand.u32 2147483647, %v360
      %vm371 = vcmp.eq.f32.partialorder %v370, 8.507059e+37
      %v372 = vand.u32 %v360, 2147483648
      %v373 = vor.u32 1.1754944e-38, %v372
      %v374 = vsel %vm371, %v373, %v369
      %v375 = vmul.f32 1.0, %v374
      %v376 = vtanh.pop %v356
      %v377 = vmul.f32 %v375, %v309
      %379 = vrot.lane.b32.xlu0 %v376, 96
      %v380 = vpop.permute.xlu0 %379
      %v382 = vmul.f32 %v375, %v380
      %384 = vrot.lane.b32.xlu0 %v382, 16
      %v385 = vpop.permute.xlu0 %384
      %v387 = vadd.f32 %v377, %v385
      %v388 = vtanh.pop %v387
      %390 = vrot.lane.b32.xlu0 %v388, 32
      %v391 = vpop.permute.xlu0 %390
      %v393 = vmul.f32 %v375, %v391
      %v394 = vpack.c.bf16 %v393, %v393
      %v396 = vrot.slane %v394, 3
      %v399 = vsel %vm319, %v394, %v396
      %401 = vrot.lane.b32.xlu0 %v399, 80
      %v402 = vpop.permute.xlu0 %401
      %s404 = scalar_lea.vmem %s229, %s332
      %405 = vst.msk [vmem:[%s404] sm:$0x1] %vm328, %v402
      %s406 = smul.u32 %s331, 2
      %s407 = sadd.s32 %s246, %s406
      %s408 = scalar_lea.vmem %s209, %s407
      %v409 = vld [vmem:[%s408] sm:$0x1]
      %v410 = vunpack.c.l.bf16 %v409
      %v411 = vunpack.c.l.b16 %v394
      %v412 = vpack.c.b16 %v411, %v411
      %413 = vrot.lane.b32.xlu0 %v412, 80
      %v414 = vpop.permute.xlu0 %413
      %v416 = vsel %vm257, %v414, 0
      %418 = vmatpush.bf16.msra.mxu0 0
      %419 = vmatpush.bf16.msra.mxu0 0
      %420 = vmatpush.bf16.msra.mxu0 0
      %421 = vmatpush.bf16.msra.mxu0 0
      %422 = vmatpush.bf16.msra.mxu0 0
      %423 = vmatpush.bf16.msra.mxu0 0
      %424 = vmatpush.bf16.msra.mxu0 0
      %425 = vmatpush.bf16.msra.mxu0 %v255
      %426 = vmatmul.bf16.gmra.mxu0 %v416
      %v427 = vpop.f32.mrf.mxu0
      %v428 = vadd.f32 0.0, %v427
      %v429 = vpop.f32.mrf.mxu0
      %430 = vdwg.mxu0
      %v431 = vadd.f32 %v410, %v428
      %v432 = vxor.u32 %v431, 2147483648
      %v433 = vmul.f32 %v432, 1.442695
      %v434 = vpow.pop %v433
      %v435 = vadd.f32 %v434, 1.0
      %v436 = vrcp.pop %v435
      %v437 = vmul.f32 %v435, %v436
      %v438 = vsub.f32 1.0, %v437
      %v439 = vmul.f32 %v436, %v438
      %v440 = vadd.f32 %v436, %v439
      %vm441 = vweird.f32 %v435
      %vm442 = vweird.f32 %v436
      %vm443 = vmor %vm441, %vm442
      %v444 = vsel %vm443, %v436, %v440
      %v445 = vand.u32 2147483647, %v435
      %vm446 = vcmp.eq.f32.partialorder %v445, 8.507059e+37
      %v447 = vand.u32 %v435, 2147483648
      %v448 = vor.u32 1.1754944e-38, %v447
      %v449 = vsel %vm446, %v448, %v444
      %v450 = vmul.f32 1.0, %v449
      %v451 = vtanh.pop %v431
      %v452 = vmul.f32 %v450, %v387
      %454 = vrot.lane.b32.xlu0 %v451, 96
      %v455 = vpop.permute.xlu0 %454
      %v457 = vmul.f32 %v450, %v455
      %459 = vrot.lane.b32.xlu0 %v457, 16
      %v460 = vpop.permute.xlu0 %459
      %v462 = vadd.f32 %v452, %v460
      %v463 = vtanh.pop %v462
      %465 = vrot.lane.b32.xlu0 %v463, 32
      %v466 = vpop.permute.xlu0 %465
      %v468 = vmul.f32 %v450, %v466
      %v469 = vpack.c.bf16 %v468, %v468
      %v471 = vrot.slane %v469, 3
      %v474 = vsel %vm319, %v469, %v471
      %476 = vrot.lane.b32.xlu0 %v474, 80
      %v477 = vpop.permute.xlu0 %476
      %s479 = scalar_lea.vmem %s229, %s407
      %480 = vst.msk [vmem:[%s479] sm:$0x1] %vm328, %v477
      %s481 = smul.u32 %s331, 3
      %s482 = sadd.s32 %s246, %s481
      %s483 = scalar_lea.vmem %s209, %s482
      %v484 = vld [vmem:[%s483] sm:$0x1]
      %v485 = vunpack.c.l.bf16 %v484
      %v486 = vunpack.c.l.b16 %v469
      %v487 = vpack.c.b16 %v486, %v486
      %488 = vrot.lane.b32.xlu0 %v487, 80
      %v489 = vpop.permute.xlu0 %488
      %v491 = vsel %vm257, %v489, 0
      %493 = vmatpush.bf16.msra.mxu0 0
      %494 = vmatpush.bf16.msra.mxu0 0
      %495 = vmatpush.bf16.msra.mxu0 0
      %496 = vmatpush.bf16.msra.mxu0 0
      %497 = vmatpush.bf16.msra.mxu0 0
      %498 = vmatpush.bf16.msra.mxu0 0
      %499 = vmatpush.bf16.msra.mxu0 0
      %500 = vmatpush.bf16.msra.mxu0 %v255
      %501 = vmatmul.bf16.gmra.mxu0 %v491
      %v502 = vpop.f32.mrf.mxu0
      %v503 = vadd.f32 0.0, %v502
      %v504 = vpop.f32.mrf.mxu0
      %505 = vdwg.mxu0
      %v506 = vadd.f32 %v485, %v503
      %v507 = vxor.u32 %v506, 2147483648
      %v508 = vmul.f32 %v507, 1.442695
      %v509 = vpow.pop %v508
      %v510 = vadd.f32 %v509, 1.0
      %v511 = vrcp.pop %v510
      %v512 = vmul.f32 %v510, %v511
      %v513 = vsub.f32 1.0, %v512
      %v514 = vmul.f32 %v511, %v513
      %v515 = vadd.f32 %v511, %v514
      %vm516 = vweird.f32 %v510
      %vm517 = vweird.f32 %v511
      %vm518 = vmor %vm516, %vm517
      %v519 = vsel %vm518, %v511, %v515
      %v520 = vand.u32 2147483647, %v510
      %vm521 = vcmp.eq.f32.partialorder %v520, 8.507059e+37
      %v522 = vand.u32 %v510, 2147483648
      %v523 = vor.u32 1.1754944e-38, %v522
      %v524 = vsel %vm521, %v523, %v519
      %v525 = vmul.f32 1.0, %v524
      %v526 = vtanh.pop %v506
      %v527 = vmul.f32 %v525, %v462
      %529 = vrot.lane.b32.xlu0 %v526, 96
      %v530 = vpop.permute.xlu0 %529
      %v532 = vmul.f32 %v525, %v530
      %534 = vrot.lane.b32.xlu0 %v532, 16
      %v535 = vpop.permute.xlu0 %534
      %v537 = vadd.f32 %v527, %v535
      %v538 = vtanh.pop %v537
      %540 = vrot.lane.b32.xlu0 %v538, 32
      %v541 = vpop.permute.xlu0 %540
      %v543 = vmul.f32 %v525, %v541
      %v544 = vpack.c.bf16 %v543, %v543
      %v546 = vrot.slane %v544, 3
      %v549 = vsel %vm319, %v544, %v546
      %551 = vrot.lane.b32.xlu0 %v549, 80
      %v552 = vpop.permute.xlu0 %551
      %s554 = scalar_lea.vmem %s229, %s482
      %555 = vst.msk [vmem:[%s554] sm:$0x1] %vm328, %v552
      %s556 = smul.u32 %s331, 4
      %s557 = sadd.s32 %s246, %s556
      %s558 = scalar_lea.vmem %s209, %s557
      %v559 = vld [vmem:[%s558] sm:$0x1]
      %v560 = vunpack.c.l.bf16 %v559
      %v561 = vunpack.c.l.b16 %v544
      %v562 = vpack.c.b16 %v561, %v561
      %563 = vrot.lane.b32.xlu0 %v562, 80
      %v564 = vpop.permute.xlu0 %563
      %v566 = vsel %vm257, %v564, 0
      %568 = vmatpush.bf16.msra.mxu0 0
      %569 = vmatpush.bf16.msra.mxu0 0
      %570 = vmatpush.bf16.msra.mxu0 0
      %571 = vmatpush.bf16.msra.mxu0 0
      %572 = vmatpush.bf16.msra.mxu0 0
      %573 = vmatpush.bf16.msra.mxu0 0
      %574 = vmatpush.bf16.msra.mxu0 0
      %575 = vmatpush.bf16.msra.mxu0 %v255
      %576 = vmatmul.bf16.gmra.mxu0 %v566
      %v577 = vpop.f32.mrf.mxu0
      %v578 = vadd.f32 0.0, %v577
      %v579 = vpop.f32.mrf.mxu0
      %580 = vdwg.mxu0
      %v581 = vadd.f32 %v560, %v578
      %v582 = vxor.u32 %v581, 2147483648
      %v583 = vmul.f32 %v582, 1.442695
      %v584 = vpow.pop %v583
      %v585 = vadd.f32 %v584, 1.0
      %v586 = vrcp.pop %v585
      %v587 = vmul.f32 %v585, %v586
      %v588 = vsub.f32 1.0, %v587
      %v589 = vmul.f32 %v586, %v588
      %v590 = vadd.f32 %v586, %v589
      %vm591 = vweird.f32 %v585
      %vm592 = vweird.f32 %v586
      %vm593 = vmor %vm591, %vm592
      %v594 = vsel %vm593, %v586, %v590
      %v595 = vand.u32 2147483647, %v585
      %vm596 = vcmp.eq.f32.partialorder %v595, 8.507059e+37
      %v597 = vand.u32 %v585, 2147483648
      %v598 = vor.u32 1.1754944e-38, %v597
      %v599 = vsel %vm596, %v598, %v594
      %v600 = vmul.f32 1.0, %v599
      %v601 = vtanh.pop %v581
      %v602 = vmul.f32 %v600, %v537
      %604 = vrot.lane.b32.xlu0 %v601, 96
      %v605 = vpop.permute.xlu0 %604
      %v607 = vmul.f32 %v600, %v605
      %609 = vrot.lane.b32.xlu0 %v607, 16
      %v610 = vpop.permute.xlu0 %609
      %v612 = vadd.f32 %v602, %v610
      %v613 = vtanh.pop %v612
      %615 = vrot.lane.b32.xlu0 %v613, 32
      %v616 = vpop.permute.xlu0 %615
      %v618 = vmul.f32 %v600, %v616
      %v619 = vpack.c.bf16 %v618, %v618
      %v621 = vrot.slane %v619, 3
      %v624 = vsel %vm319, %v619, %v621
      %626 = vrot.lane.b32.xlu0 %v624, 80
      %v627 = vpop.permute.xlu0 %626
      %s629 = scalar_lea.vmem %s229, %s557
      %630 = vst.msk [vmem:[%s629] sm:$0x1] %vm328, %v627
      %s631 = smul.u32 %s331, 5
      %s632 = sadd.s32 %s246, %s631
      %s633 = scalar_lea.vmem %s209, %s632
      %v634 = vld [vmem:[%s633] sm:$0x1]
      %v635 = vunpack.c.l.bf16 %v634
      %v636 = vunpack.c.l.b16 %v619
      %v637 = vpack.c.b16 %v636, %v636
      %638 = vrot.lane.b32.xlu0 %v637, 80
      %v639 = vpop.permute.xlu0 %638
      %v641 = vsel %vm257, %v639, 0
      %643 = vmatpush.bf16.msra.mxu0 0
      %644 = vmatpush.bf16.msra.mxu0 0
      %645 = vmatpush.bf16.msra.mxu0 0
      %646 = vmatpush.bf16.msra.mxu0 0
      %647 = vmatpush.bf16.msra.mxu0 0
      %648 = vmatpush.bf16.msra.mxu0 0
      %649 = vmatpush.bf16.msra.mxu0 0
      %650 = vmatpush.bf16.msra.mxu0 %v255
      %651 = vmatmul.bf16.gmra.mxu0 %v641
      %v652 = vpop.f32.mrf.mxu0
      %v653 = vadd.f32 0.0, %v652
      %v654 = vpop.f32.mrf.mxu0
      %655 = vdwg.mxu0
      %v656 = vadd.f32 %v635, %v653
      %v657 = vxor.u32 %v656, 2147483648
      %v658 = vmul.f32 %v657, 1.442695
      %v659 = vpow.pop %v658
      %v660 = vadd.f32 %v659, 1.0
      %v661 = vrcp.pop %v660
      %v662 = vmul.f32 %v660, %v661
      %v663 = vsub.f32 1.0, %v662
      %v664 = vmul.f32 %v661, %v663
      %v665 = vadd.f32 %v661, %v664
      %vm666 = vweird.f32 %v660
      %vm667 = vweird.f32 %v661
      %vm668 = vmor %vm666, %vm667
      %v669 = vsel %vm668, %v661, %v665
      %v670 = vand.u32 2147483647, %v660
      %vm671 = vcmp.eq.f32.partialorder %v670, 8.507059e+37
      %v672 = vand.u32 %v660, 2147483648
      %v673 = vor.u32 1.1754944e-38, %v672
      %v674 = vsel %vm671, %v673, %v669
      %v675 = vmul.f32 1.0, %v674
      %v676 = vtanh.pop %v656
      %v677 = vmul.f32 %v675, %v612
      %679 = vrot.lane.b32.xlu0 %v676, 96
      %v680 = vpop.permute.xlu0 %679
      %v682 = vmul.f32 %v675, %v680
      %684 = vrot.lane.b32.xlu0 %v682, 16
      %v685 = vpop.permute.xlu0 %684
      %v687 = vadd.f32 %v677, %v685
      %v688 = vtanh.pop %v687
      %690 = vrot.lane.b32.xlu0 %v688, 32
      %v691 = vpop.permute.xlu0 %690
      %v693 = vmul.f32 %v675, %v691
      %v694 = vpack.c.bf16 %v693, %v693
      %v696 = vrot.slane %v694, 3
      %v699 = vsel %vm319, %v694, %v696
      %701 = vrot.lane.b32.xlu0 %v699, 80
      %v702 = vpop.permute.xlu0 %701
      %s704 = scalar_lea.vmem %s229, %s632
      %705 = vst.msk [vmem:[%s704] sm:$0x1] %vm328, %v702
      %s706 = smul.u32 %s331, 6
      %s707 = sadd.s32 %s246, %s706
      %s708 = scalar_lea.vmem %s209, %s707
      %v709 = vld [vmem:[%s708] sm:$0x1]
      %v710 = vunpack.c.l.bf16 %v709
      %v711 = vunpack.c.l.b16 %v694
      %v712 = vpack.c.b16 %v711, %v711
      %713 = vrot.lane.b32.xlu0 %v712, 80
      %v714 = vpop.permute.xlu0 %713
      %v716 = vsel %vm257, %v714, 0
      %718 = vmatpush.bf16.msra.mxu0 0
      %719 = vmatpush.bf16.msra.mxu0 0
      %720 = vmatpush.bf16.msra.mxu0 0
      %721 = vmatpush.bf16.msra.mxu0 0
      %722 = vmatpush.bf16.msra.mxu0 0
      %723 = vmatpush.bf16.msra.mxu0 0
      %724 = vmatpush.bf16.msra.mxu0 0
      %725 = vmatpush.bf16.msra.mxu0 %v255
      %726 = vmatmul.bf16.gmra.mxu0 %v716
      %v727 = vpop.f32.mrf.mxu0
      %v728 = vadd.f32 0.0, %v727
      %v729 = vpop.f32.mrf.mxu0
      %730 = vdwg.mxu0
      %v731 = vadd.f32 %v710, %v728
      %v732 = vxor.u32 %v731, 2147483648
      %v733 = vmul.f32 %v732, 1.442695
      %v734 = vpow.pop %v733
      %v735 = vadd.f32 %v734, 1.0
      %v736 = vrcp.pop %v735
      %v737 = vmul.f32 %v735, %v736
      %v738 = vsub.f32 1.0, %v737
      %v739 = vmul.f32 %v736, %v738
      %v740 = vadd.f32 %v736, %v739
      %vm741 = vweird.f32 %v735
      %vm742 = vweird.f32 %v736
      %vm743 = vmor %vm741, %vm742
      %v744 = vsel %vm743, %v736, %v740
      %v745 = vand.u32 2147483647, %v735
      %vm746 = vcmp.eq.f32.partialorder %v745, 8.507059e+37
      %v747 = vand.u32 %v735, 2147483648
      %v748 = vor.u32 1.1754944e-38, %v747
      %v749 = vsel %vm746, %v748, %v744
      %v750 = vmul.f32 1.0, %v749
      %v751 = vtanh.pop %v731
      %v752 = vmul.f32 %v750, %v687
      %754 = vrot.lane.b32.xlu0 %v751, 96
      %v755 = vpop.permute.xlu0 %754
      %v757 = vmul.f32 %v750, %v755
      %759 = vrot.lane.b32.xlu0 %v757, 16
      %v760 = vpop.permute.xlu0 %759
      %v762 = vadd.f32 %v752, %v760
      %v763 = vtanh.pop %v762
      %765 = vrot.lane.b32.xlu0 %v763, 32
      %v766 = vpop.permute.xlu0 %765
      %v768 = vmul.f32 %v750, %v766
      %v769 = vpack.c.bf16 %v768, %v768
      %v771 = vrot.slane %v769, 3
      %v774 = vsel %vm319, %v769, %v771
      %776 = vrot.lane.b32.xlu0 %v774, 80
      %v777 = vpop.permute.xlu0 %776
      %s779 = scalar_lea.vmem %s229, %s707
      %780 = vst.msk [vmem:[%s779] sm:$0x1] %vm328, %v777
      %s781 = smul.u32 %s331, 7
      %s782 = sadd.s32 %s246, %s781
      %s783 = scalar_lea.vmem %s209, %s782
      %v784 = vld [vmem:[%s783] sm:$0x1]
      %v785 = vunpack.c.l.bf16 %v784
      %v786 = vunpack.c.l.b16 %v769
      %v787 = vpack.c.b16 %v786, %v786
      %788 = vrot.lane.b32.xlu0 %v787, 80
      %v789 = vpop.permute.xlu0 %788
      %v791 = vsel %vm257, %v789, 0
      %793 = vmatpush.bf16.msra.mxu0 0
      %794 = vmatpush.bf16.msra.mxu0 0
      %795 = vmatpush.bf16.msra.mxu0 0
      %796 = vmatpush.bf16.msra.mxu0 0
      %797 = vmatpush.bf16.msra.mxu0 0
      %798 = vmatpush.bf16.msra.mxu0 0
      %799 = vmatpush.bf16.msra.mxu0 0
      %800 = vmatpush.bf16.msra.mxu0 %v255
      %801 = vmatmul.bf16.gmra.mxu0 %v791
      %v802 = vpop.f32.mrf.mxu0
      %v803 = vadd.f32 0.0, %v802
      %v804 = vpop.f32.mrf.mxu0
      %805 = vdwg.mxu0
      %v806 = vadd.f32 %v785, %v803
      %v807 = vxor.u32 %v806, 2147483648
      %v808 = vmul.f32 %v807, 1.442695
      %v809 = vpow.pop %v808
      %v810 = vadd.f32 %v809, 1.0
      %v811 = vrcp.pop %v810
      %v812 = vmul.f32 %v810, %v811
      %v813 = vsub.f32 1.0, %v812
      %v814 = vmul.f32 %v811, %v813
      %v815 = vadd.f32 %v811, %v814
      %vm816 = vweird.f32 %v810
      %vm817 = vweird.f32 %v811
      %vm818 = vmor %vm816, %vm817
      %v819 = vsel %vm818, %v811, %v815
      %v820 = vand.u32 2147483647, %v810
      %vm821 = vcmp.eq.f32.partialorder %v820, 8.507059e+37
      %v822 = vand.u32 %v810, 2147483648
      %v823 = vor.u32 1.1754944e-38, %v822
      %v824 = vsel %vm821, %v823, %v819
      %v825 = vmul.f32 1.0, %v824
      %v826 = vtanh.pop %v806
      %v827 = vmul.f32 %v825, %v762
      %829 = vrot.lane.b32.xlu0 %v826, 96
      %v830 = vpop.permute.xlu0 %829
      %v832 = vmul.f32 %v825, %v830
      %834 = vrot.lane.b32.xlu0 %v832, 16
      %v835 = vpop.permute.xlu0 %834
      %v837 = vadd.f32 %v827, %v835
      %v838 = vtanh.pop %v837
      %840 = vrot.lane.b32.xlu0 %v838, 32
      %v841 = vpop.permute.xlu0 %840
      %v843 = vmul.f32 %v825, %v841
      %v844 = vpack.c.bf16 %v843, %v843
      %v846 = vrot.slane %v844, 3
      %v849 = vsel %vm319, %v844, %v846
      %851 = vrot.lane.b32.xlu0 %v849, 80
      %v852 = vpop.permute.xlu0 %851
      %s854 = scalar_lea.vmem %s229, %s782
      %855 = vst.msk [vmem:[%s854] sm:$0x1] %vm328, %v852
      %857 = vst [vmem:[#allocation1] ss:$4 sm:$0xff] %v843
      %v858 = vld.sshfl [vmem:[#allocation1] sm:$0xff pattern:$0x73625140]
      %859 = vrot.lane.b32.xlu0 %v858, 80
      %v860 = vpop.permute.xlu0 %859
      %vm862 = vcmask 123904
      %863 = vst.msk [vmem:[#allocation2] sm:$0x3] %vm862, %v860
      %865 = vst [vmem:[#allocation1] ss:$4 sm:$0xff] %v837
      %v866 = vld.sshfl [vmem:[#allocation1] sm:$0xff pattern:$0x73625140]
      %867 = vrot.lane.b32.xlu0 %v866, 112
      %v868 = vpop.permute.xlu0 %867
      %870 = vst.msk [vmem:[#allocation3] sm:$0x3] %vm862, %v868
      %s871 = smul.u32 %s17, 2
      %s872 = ssub.s32 1, %s871
      %s873 = smul.u32 %s872, %s18
      %s874 = smul.u32 8, %s873
      %p875 = scmp.lt.s32.totalorder %s17, 1
      %s876 = scalar_select %p875, %s17, 1
      %p877 = scmp.lt.s32.totalorder %s874, 7
      %s878 = scalar_select %p877, %s874, 7
      %s879 = smul.addr %s876, 8
      %s880 = sadd.s32 %s878, %s879
      %s881 = scalar_lea.vmem %s2, %s880
      // Predicated region
      $region33: #{openunmix_forward.9} parent=27 // pred_check
        %p882 = pneg %p111
      $region34: #{openunmix_forward.9} parent=27 // pred_check_branch
        %884 = sbr.rel (%p882) target = $region36
      $region35: #{openunmix_forward.9} parent=27 // pred_region
        %s885 = smul.u32 %s17, 2
        %s886 = ssub.s32 1, %s885
        %s887 = smul.u32 %s886, %s18
        %s888 = smul.u32 8, %s887
      $region36: #{openunmix_forward.9} parent=27 // pred_fallthru
        _
    $region28: #{openunmix_forward.9} parent=5 // pred_fallthru
      _
    %p889 = scmp.le.s32.totalorder 2, %s8
    // Predicated region
    $region37: #{openunmix_forward.9} parent=5 // pred_check
      %p890 = pneg %p889
    $region38: #{openunmix_forward.9} parent=5 // pred_check_branch
      %892 = sbr.rel (%p890) target = $region40
    $region39: #{openunmix_forward.9} parent=5 // pred_region
      %s893 = ssub.s32 %s8, 2
      // Predicated region
      $region41: #{openunmix_forward.9} parent=39 // pred_check
        %p894 = pneg %p117
      $region42: #{openunmix_forward.9} parent=39 // pred_check_branch
        %896 = sbr.rel (%p894) target = $region44
      $region43: #{openunmix_forward.9} parent=39 // pred_region
        %s897 = smul.u32 %s19, 2
        %s898 = ssub.s32 1, %s897
        %s899 = smul.u32 %s898, %s20
        %s900 = smul.u32 8, %s899
        %p901 = scmp.lt.s32.totalorder %s19, 1
        %s902 = scalar_select %p901, %s19, 1
        %p903 = scmp.lt.s32.totalorder %s900, 7
        %s904 = scalar_select %p903, %s900, 7
        %s905 = smul.addr %s902, 8
        %s906 = sadd.s32 %s904, %s905
        %s907 = scalar_lea.vmem %s2, %s906
      $region44: #{openunmix_forward.9} parent=39 // pred_fallthru
        _
    $region40: #{openunmix_forward.9} parent=5 // pred_fallthru
      _
  $region6: #{openunmix_forward.9} parent=0 // loop_footer
    %s12 = sadd.s32 1, %s8
  $region7: #{openunmix_forward.9} parent=0 // loop_footer_branch
    %7 = sbr.rel target = $region3
  $region8: #{openunmix_forward.9} parent=0 // loop_exit
    _

// kernel: openunmix_forward.12
$region0: #{openunmix_forward.12}
  #allocation0 [shape = 'u32[]', space=smem, size = 0x4, offset = 0x4, fixed_abs, tag = 'smem constant byte address 0x4 - core index']
  #allocation1 [shape = 'u32[72,128]{1,0:T(1,128)}', space=vmem, size = 0x9000, scoped, tag = 'internal scratch']
  %s0 = inlined_call_operand.vmem [shape: f32[16,32], index: 0, kind: input, shape index: {}]
  %s1 = inlined_call_operand.vmem [shape: bf16[2,16,16], index: 1, kind: input, shape index: {}]
  %s2 = inlined_call_operand.vmem [shape: bf16[32,32], index: 2, kind: input, shape index: {}]
  %s3 = inlined_call_operand.vmem [shape: bf16[16,32], index: 3, kind: input, shape index: {}]
  %s4 = inlined_call_operand.vmem [shape: bf16[16,32], index: 4, kind: input, shape index: {}]
  %s5 = inlined_call_operand.vmem [shape: f32[1,32], index: 5, kind: input, shape index: {}]
  %s6 = inlined_call_operand.vmem [shape: f32[1,32], index: 6, kind: input, shape index: {}]
  %s7 = inlined_call_operand.vmem [shape: bf16[16,32], index: 7, kind: output, shape index: {}]
  %s8 = sld [smem:[#allocation0]]
  $region38: #{openunmix_forward.12} parent=0
    _
  %s10 = ssub.s32 1, %s8
  %s11 = scalar_select 0, %s10, %s8
  // Predicated region
  $region2: #{openunmix_forward.12} parent=0 // pred_check
    _
  $region3: #{openunmix_forward.12} parent=0 // pred_check_branch
    %13 = sbr.rel (0) target = $region5
  $region4: #{openunmix_forward.12} parent=0 // pred_region
    _
  $region5: #{openunmix_forward.12} parent=0 // pred_fallthru
    _
  // Predicated region
  $region6: #{openunmix_forward.12} parent=0 // pred_check
    _
  $region7: #{openunmix_forward.12} parent=0 // pred_check_branch
    %15 = sbr.rel (0) target = $region9
  $region8: #{openunmix_forward.12} parent=0 // pred_region
    _
  $region9: #{openunmix_forward.12} parent=0 // pred_fallthru
    _
  // Predicated region
  $region10: #{openunmix_forward.12} parent=0 // pred_check
    _
  $region11: #{openunmix_forward.12} parent=0 // pred_check_branch
    %17 = sbr.rel (0) target = $region13
  $region12: #{openunmix_forward.12} parent=0 // pred_region
    _
  $region13: #{openunmix_forward.12} parent=0 // pred_fallthru
    _
  // Predicated region
  $region14: #{openunmix_forward.12} parent=0 // pred_check
    _
  $region15: #{openunmix_forward.12} parent=0 // pred_check_branch
    %19 = sbr.rel (0) target = $region17
  $region16: #{openunmix_forward.12} parent=0 // pred_region
    _
  $region17: #{openunmix_forward.12} parent=0 // pred_fallthru
    _
  // Predicated region
  $region18: #{openunmix_forward.12} parent=0 // pred_check
    _
  $region19: #{openunmix_forward.12} parent=0 // pred_check_branch
    %21 = sbr.rel (0) target = $region21
  $region20: #{openunmix_forward.12} parent=0 // pred_region
    _
  $region21: #{openunmix_forward.12} parent=0 // pred_fallthru
    _
  // Predicated region
  $region22: #{openunmix_forward.12} parent=0 // pred_check
    _
  $region23: #{openunmix_forward.12} parent=0 // pred_check_branch
    %23 = sbr.rel (0) target = $region25
  $region24: #{openunmix_forward.12} parent=0 // pred_region
    _
  $region25: #{openunmix_forward.12} parent=0 // pred_fallthru
    _
  // Predicated region
  $region26: #{openunmix_forward.12} parent=0 // pred_check
    _
  $region27: #{openunmix_forward.12} parent=0 // pred_check_branch
    %25 = sbr.rel (0) target = $region29
  $region28: #{openunmix_forward.12} parent=0 // pred_region
    _
  $region29: #{openunmix_forward.12} parent=0 // pred_fallthru
    _
  %v27 = vld [vmem:[%s0] sm:$0xff]
  %v28 = vld [vmem:[%s0 + $0x8] sm:$0xff]
  %v29 = vpack.c.bf16 %v28, %v27
  %v30 = vld [vmem:[%s2] sm:$0xf]
  %v31 = vld [vmem:[%s2 + $0x4] sm:$0xf]
  %v32 = vld [vmem:[%s2 + $0x8] sm:$0xf]
  %v33 = vld [vmem:[%s2 + $0xc] sm:$0xf]
  %v34 = vld [vmem:[%s1] sm:$0xf]
  %v35 = vld [vmem:[%s1 + $0x4] sm:$0xf]
  %v36 = vld [vmem:[%s3] sm:$0xf]
  %v37 = vld [vmem:[%s3 + $0x4] sm:$0xf]
  %v40 = vunpack.c.l.b16 %v34
  %v41 = vunpack.c.l.b16 %v35
  %v42 = vpack.c.b16 %v41, %v40
  %v45 = vunpack.c.l.b16 %v36
  %v46 = vunpack.c.l.b16 %v37
  %v47 = vpack.c.b16 %v46, %v45
  %vm49 = vcmask 130048
  %v51 = vsel %vm49, %v42, 0
  %53 = vmatpush.bf16.msra.mxu0 0
  %54 = vmatpush.bf16.msra.mxu0 0
  %55 = vmatpush.bf16.msra.mxu0 0
  %56 = vmatpush.bf16.msra.mxu0 0
  %57 = vmatpush.bf16.msra.mxu0 0
  %58 = vmatpush.bf16.msra.mxu0 0
  %59 = vmatpush.bf16.msra.mxu0 0
  %60 = vmatpush.bf16.msra.mxu0 %v47
  %61 = vmatmul.bf16.gmra.mxu0 %v51
  %v62 = vpop.f32.mrf.mxu0
  %v63 = vadd.f32 0.0, %v62
  %v64 = vpop.f32.mrf.mxu0
  %v65 = vadd.f32 0.0, %v64
  %66 = vdwg.mxu0
  %v71 = vunpack.c.l.b16 %v30
  %v72 = vunpack.c.l.b16 %v31
  %v73 = vunpack.c.l.b16 %v32
  %v74 = vunpack.c.l.b16 %v33
  %v75 = vpack.c.b16 %v72, %v71
  %v76 = vpack.c.b16 %v74, %v73
  %vm79 = vcmask 261120
  %v81 = vsel %vm79, %v29, 0
  %83 = vmatpush.bf16.msra.mxu0 0
  %84 = vmatpush.bf16.msra.mxu0 0
  %85 = vmatpush.bf16.msra.mxu0 0
  %86 = vmatpush.bf16.msra.mxu0 0
  %87 = vmatpush.bf16.msra.mxu0 0
  %88 = vmatpush.bf16.msra.mxu0 0
  %89 = vmatpush.bf16.msra.mxu0 %v76
  %90 = vmatpush.bf16.msra.mxu0 %v75
  %91 = vmatmul.bf16.gmra.mxu0 %v81
  %v92 = vpop.f32.mrf.mxu0
  %v93 = vadd.f32 %v63, %v92
  %v94 = vpop.f32.mrf.mxu0
  %v95 = vadd.f32 %v65, %v94
  %96 = vdwg.mxu0
  %s97 = scalar_lea.vmem %s1, 8
  %v98 = vld [vmem:[%s97] sm:$0xf]
  %v99 = vld [vmem:[%s97 + $0x4] sm:$0xf]
  %v100 = vld [vmem:[%s4] sm:$0xf]
  %v101 = vld [vmem:[%s4 + $0x4] sm:$0xf]
  %v104 = vunpack.c.l.b16 %v98
  %v105 = vunpack.c.l.b16 %v99
  %v106 = vpack.c.b16 %v105, %v104
  %v109 = vunpack.c.l.b16 %v100
  %v110 = vunpack.c.l.b16 %v101
  %v111 = vpack.c.b16 %v110, %v109
  %v114 = vsel %vm49, %v106, 0
  %116 = vmatpush.bf16.msra.mxu0 0
  %117 = vmatpush.bf16.msra.mxu0 0
  %118 = vmatpush.bf16.msra.mxu0 0
  %119 = vmatpush.bf16.msra.mxu0 0
  %120 = vmatpush.bf16.msra.mxu0 0
  %121 = vmatpush.bf16.msra.mxu0 0
  %122 = vmatpush.bf16.msra.mxu0 0
  %123 = vmatpush.bf16.msra.mxu0 %v111
  %124 = vmatmul.bf16.gmra.mxu0 %v114
  %v125 = vpop.f32.mrf.mxu0
  %v126 = vadd.f32 0.0, %v125
  %v127 = vpop.f32.mrf.mxu0
  %v128 = vadd.f32 0.0, %v127
  %129 = vdwg.mxu0
  %v130 = vadd.f32 %v93, %v126
  %v131 = vadd.f32 %v95, %v128
  %v132 = vld [vmem:[%s5] sm:$0x1]
  %v134 = vperm.slane %v132, 0
  %v136 = vmul.f32 %v130, %v134
  %v137 = vmul.f32 %v131, %v134
  %v138 = vld [vmem:[%s6] sm:$0x1]
  %v140 = vperm.slane %v138, 0
  %v142 = vadd.f32 %v136, %v140
  %v143 = vadd.f32 %v137, %v140
  %v144 = vmax.f32 %v142, 0.0
  %v145 = vmax.f32 %v143, 0.0
  %v146 = vpack.c.bf16 %v144, %v144
  %v147 = vpack.c.bf16 %v145, %v145
  %vm148 = vcmask 257024
  %149 = vst.msk [vmem:[%s7] sm:$0xf] %vm148, %v146
  %150 = vst.msk [vmem:[%s7 + $0x4] sm:$0xf] %vm148, %v147
  // Predicated region
  $region30: #{openunmix_forward.12} parent=0 // pred_check
    _
  $region31: #{openunmix_forward.12} parent=0 // pred_check_branch
    %152 = sbr.rel (0) target = $region33
  $region32: #{openunmix_forward.12} parent=0 // pred_region
    _
  $region33: #{openunmix_forward.12} parent=0 // pred_fallthru
    _
  // Predicated region
  $region34: #{openunmix_forward.12} parent=0 // pred_check
    _
  $region35: #{openunmix_forward.12} parent=0 // pred_check_branch
    %154 = sbr.rel (0) target = $region37
  $region36: #{openunmix_forward.12} parent=0 // pred_region
    _
  $region37: #{openunmix_forward.12} parent=0 // pred_fallthru
    _

// kernel: openunmix_forward.13
$region0: #{openunmix_forward.13}
  #allocation0 [shape = 'u32[]', space=smem, size = 0x4, offset = 0x4, fixed_abs, tag = 'smem constant byte address 0x4 - core index']
  #allocation1 [shape = 'u32[72,128]{1,0:T(1,128)}', space=vmem, size = 0x9000, scoped, tag = 'internal scratch']
  %s0 = inlined_call_operand.vmem [shape: bf16[16,32], index: 0, kind: input, shape index: {}]
  %s1 = inlined_call_operand.vmem [shape: bf16[16,32], index: 1, kind: input, shape index: {}]
  %s2 = inlined_call_operand.vmem [shape: bf16[32,32], index: 2, kind: input, shape index: {}]
  %s3 = inlined_call_operand.vmem [shape: f32[1,32], index: 3, kind: input, shape index: {}]
  %s4 = inlined_call_operand.vmem [shape: f32[1,32], index: 4, kind: input, shape index: {}]
  %s5 = inlined_call_operand.vmem [shape: f32[16,32], index: 5, kind: output, shape index: {}]
  %s6 = sld [smem:[#allocation0]]
  $region30: #{openunmix_forward.13} parent=0
    _
  %s8 = ssub.s32 1, %s6
  %s9 = scalar_select 0, %s8, %s6
  // Predicated region
  $region2: #{openunmix_forward.13} parent=0 // pred_check
    _
  $region3: #{openunmix_forward.13} parent=0 // pred_check_branch
    %11 = sbr.rel (0) target = $region5
  $region4: #{openunmix_forward.13} parent=0 // pred_region
    _
  $region5: #{openunmix_forward.13} parent=0 // pred_fallthru
    _
  // Predicated region
  $region6: #{openunmix_forward.13} parent=0 // pred_check
    _
  $region7: #{openunmix_forward.13} parent=0 // pred_check_branch
    %13 = sbr.rel (0) target = $region9
  $region8: #{openunmix_forward.13} parent=0 // pred_region
    _
  $region9: #{openunmix_forward.13} parent=0 // pred_fallthru
    _
  // Predicated region
  $region10: #{openunmix_forward.13} parent=0 // pred_check
    _
  $region11: #{openunmix_forward.13} parent=0 // pred_check_branch
    %15 = sbr.rel (0) target = $region13
  $region12: #{openunmix_forward.13} parent=0 // pred_region
    _
  $region13: #{openunmix_forward.13} parent=0 // pred_fallthru
    _
  // Predicated region
  $region14: #{openunmix_forward.13} parent=0 // pred_check
    _
  $region15: #{openunmix_forward.13} parent=0 // pred_check_branch
    %17 = sbr.rel (0) target = $region17
  $region16: #{openunmix_forward.13} parent=0 // pred_region
    _
  $region17: #{openunmix_forward.13} parent=0 // pred_fallthru
    _
  // Predicated region
  $region18: #{openunmix_forward.13} parent=0 // pred_check
    _
  $region19: #{openunmix_forward.13} parent=0 // pred_check_branch
    %19 = sbr.rel (0) target = $region21
  $region20: #{openunmix_forward.13} parent=0 // pred_region
    _
  $region21: #{openunmix_forward.13} parent=0 // pred_fallthru
    _
  %v21 = vld [vmem:[%s0] sm:$0xf]
  %v22 = vld [vmem:[%s0 + $0x4] sm:$0xf]
  %v23 = vld [vmem:[%s2] sm:$0xf]
  %v24 = vld [vmem:[%s2 + $0x4] sm:$0xf]
  %v25 = vld [vmem:[%s2 + $0x8] sm:$0xf]
  %v26 = vld [vmem:[%s2 + $0xc] sm:$0xf]
  %v29 = vunpack.c.l.b16 %v21
  %v30 = vunpack.c.l.b16 %v22
  %v31 = vpack.c.b16 %v30, %v29
  %v36 = vunpack.c.l.b16 %v23
  %v37 = vunpack.c.l.b16 %v24
  %v38 = vunpack.c.l.b16 %v25
  %v39 = vunpack.c.l.b16 %v26
  %v40 = vpack.c.b16 %v37, %v36
  %v41 = vpack.c.b16 %v39, %v38
  %vm44 = vcmask 261120
  %v46 = vsel %vm44, %v31, 0
  %48 = vmatpush.bf16.msra.mxu0 0
  %49 = vmatpush.bf16.msra.mxu0 0
  %50 = vmatpush.bf16.msra.mxu0 0
  %51 = vmatpush.bf16.msra.mxu0 0
  %52 = vmatpush.bf16.msra.mxu0 0
  %53 = vmatpush.bf16.msra.mxu0 0
  %54 = vmatpush.bf16.msra.mxu0 %v41
  %55 = vmatpush.bf16.msra.mxu0 %v40
  %56 = vmatmul.bf16.gmra.mxu0 %v46
  %v57 = vpop.f32.mrf.mxu0
  %v58 = vadd.f32 0.0, %v57
  %v59 = vpop.f32.mrf.mxu0
  %v60 = vadd.f32 0.0, %v59
  %61 = vdwg.mxu0
  %v62 = vld [vmem:[%s3] sm:$0x1]
  %v64 = vperm.slane %v62, 0
  %v66 = vmul.f32 %v58, %v64
  %v67 = vmul.f32 %v60, %v64
  %v68 = vld [vmem:[%s4] sm:$0x1]
  %v70 = vperm.slane %v68, 0
  %v72 = vadd.f32 %v66, %v70
  %v73 = vadd.f32 %v67, %v70
  %v74 = vmax.f32 %v72, 0.0
  %v75 = vmax.f32 %v73, 0.0
  %v76 = vld [vmem:[%s1] sm:$0xf]
  %v77 = vld [vmem:[%s1 + $0x4] sm:$0xf]
  %v78 = vunpack.c.l.bf16 %v76
  %v79 = vunpack.c.l.bf16 %v77
  %v80 = vmul.f32 %v74, %v78
  %v81 = vmul.f32 %v75, %v79
  %82 = vst.msk [vmem:[%s5] sm:$0xff] %vm44, %v80
  %83 = vst.msk [vmem:[%s5 + $0x8] sm:$0xff] %vm44, %v81
  // Predicated region
  $region22: #{openunmix_forward.13} parent=0 // pred_check
    _
  $region23: #{openunmix_forward.13} parent=0 // pred_check_branch
    %85 = sbr.rel (0) target = $region25
  $region24: #{openunmix_forward.13} parent=0 // pred_region
    _
  $region25: #{openunmix_forward.13} parent=0 // pred_fallthru
    _
  // Predicated region
  $region26: #{openunmix_forward.13} parent=0 // pred_check
    _
  $region27: #{openunmix_forward.13} parent=0 // pred_check_branch
    %87 = sbr.rel (0) target = $region29
  $region28: #{openunmix_forward.13} parent=0 // pred_region
    _
  $region29: #{openunmix_forward.13} parent=0 // pred_fallthru
    _

</llo_original>
